<compile_context>
chip_gen: v6e
topology: v6e:2x2x1
jax: 0.10.0
libtpu: 0.0.40
codegen_flags: <defaults>
</compile_context>

<pallas_src>
import functools

import jax
import jax.numpy as jnp
import numpy as np
from jax.experimental import pallas as pl
from jax.experimental.pallas import tpu as pltpu


# ---------------------------------------------------------------------------
# Shared LSTM cell math (PyTorch gate order: i, f, g, o)
# ---------------------------------------------------------------------------
def _lstm_cell(gates, c, H):
    i = jax.nn.sigmoid(gates[:, 0 * H:1 * H])
    f = jax.nn.sigmoid(gates[:, 1 * H:2 * H])
    g = jnp.tanh(gates[:, 2 * H:3 * H])
    o = jax.nn.sigmoid(gates[:, 3 * H:4 * H])
    c_new = f * c + i * g
    h_new = o * jnp.tanh(c_new)
    return h_new, c_new


# ---------------------------------------------------------------------------
# Single fused kernel: (folded conv+encoder) -> encoder LSTM -> T decoder steps
# ---------------------------------------------------------------------------
def seq2seq_cnn_kernel(x_ref, h0_ref, c0_ref,
                       wenc_ref, benc_ref, ewhh_ref,
                       wd0_ref, wd1_ref, dwhh_ref, bd0_ref,
                       wdcomb_ref, bdcomb_ref,
                       wblock_ref, blast_ref,
                       out_ref):
    SB, F = x_ref.shape                  # time-major 2D input (S*B, F)
    B, H = h0_ref.shape
    T = out_ref.shape[1]
    S = SB // B
    H4 = 4 * H

    x = x_ref[...]                                                        # (S*B, F)

    # ---- Conv1d folded into encoder input projection: one lane-dense MXU push ----
    G = jnp.dot(x, wenc_ref[...], preferred_element_type=jnp.float32)    # (S*B, 12H)
    b_enc = benc_ref[...]                                                 # (1, 4H)

    # Per-timestep input->gate contributions (off the serial recurrence chain).
    # xg_t = x_{t-1}@W0e + x_t@W1e + x_{t+1}@W2e + b_enc  (zero-padded conv boundaries
    # handled by dropping the out-of-range terms).
    xg = []
    for t in range(S):
        g = G[t * B:(t + 1) * B, H4:2 * H4] + b_enc
        if t > 0:
            g = g + G[(t - 1) * B:t * B, 0:H4]
        if t < S - 1:
            g = g + G[(t + 1) * B:(t + 2) * B, 2 * H4:3 * H4]
        xg.append(g)

    # Decoder step-0 input->gates: conv[S-1] folded into dec_wih (also off-chain).
    dec0_x = (jnp.dot(x[(S - 1) * B:S * B, :], wd1_ref[...],
                      preferred_element_type=jnp.float32) + bd0_ref[...])
    if S >= 2:
        dec0_x = dec0_x + jnp.dot(x[(S - 2) * B:(S - 1) * B, :], wd0_ref[...],
                                  preferred_element_type=jnp.float32)

    # ---- Encoder recurrence: only h @ Whh remains on the serial chain ----
    e_whh = ewhh_ref[...]
    h = h0_ref[...]
    c = c0_ref[...]
    for t in range(S):                   # S=8, fully unrolled at trace time
        gates = xg[t] + jnp.dot(h, e_whh, preferred_element_type=jnp.float32)
        h, c = _lstm_cell(gates, c, H)

    # ---- Decoder: ONE serial matmul per step (w_out folded into dec_wih) ----
    d_whh = dwhh_ref[...]
    gates = dec0_x + jnp.dot(h, d_whh, preferred_element_type=jnp.float32)
    h, c = _lstm_cell(gates, c, H)
    hs = [h]
    wd_comb = wdcomb_ref[...]
    bd_comb = bdcomb_ref[...]
    for _ in range(T - 1):               # T=4, fully unrolled
        gates = jnp.dot(h, wd_comb, preferred_element_type=jnp.float32) + bd_comb
        h, c = _lstm_cell(gates, c, H)
        hs.append(h)

    # Predictions (last feature only), off the serial chain:
    # (B, T*H) @ (T*H, T) block-diagonal head -> final (B, T) slab, single store.
    h_cat = jnp.concatenate(hs, axis=1)                                   # (B, T*H)
    out_ref[...] = (jnp.dot(h_cat, wblock_ref[...],
                            preferred_element_type=jnp.float32) + blast_ref[...])


# ---------------------------------------------------------------------------
# Wrapper mirroring Seq2seqLSTMWithCNN.forward (inference path)
# ---------------------------------------------------------------------------
@functools.partial(jax.jit, static_argnames=("output_size",))
def seq2seq_forward(params, input_seq, h0, c0, *, output_size):
    B, S, F = input_seq.shape
    H = h0.shape[-1]
    f32 = jnp.float32

    wc = params["w_conv"]                  # (F_out, F_in, 3)
    e_wih_t = params["enc_wih"].T          # (F, 4H)
    e_whh_t = params["enc_whh"].T          # (H, 4H)
    d_wih_t = params["dec_wih"].T          # (F, 4H)
    d_whh_t = params["dec_whh"].T          # (H, 4H)
    w_out_t = params["w_out"].T            # (H, F)

    # ---- weight folding (float32, once per call, outside the kernel) ----
    wenc = jnp.concatenate([wc[:, :, 0].T @ e_wih_t,
                            wc[:, :, 1].T @ e_wih_t,
                            wc[:, :, 2].T @ e_wih_t], axis=1)              # (F, 12H)
    benc = (params["b_conv"] @ e_wih_t + params["enc_b"])[None, :]         # (1, 4H)

    wd0 = wc[:, :, 0].T @ d_wih_t                                          # (F, 4H)
    wd1 = wc[:, :, 1].T @ d_wih_t                                          # (F, 4H)
    bd0 = (params["b_conv"] @ d_wih_t + params["dec_b"])[None, :]          # (1, 4H)

    wdcomb = w_out_t @ d_wih_t + d_whh_t                                   # (H, 4H)
    bdcomb = (params["b_out"] @ d_wih_t + params["dec_b"])[None, :]        # (1, 4H)

    # Block-diagonal head for the LAST feature of each of the T predictions.
    w_last = w_out_t[:, -1]                                                # (H,)
    wblock = (jnp.eye(output_size, dtype=f32)[:, None, :]
              * w_last[None, :, None]).reshape(output_size * H, output_size)
    blast = jnp.full((1, output_size), params["b_out"][-1], f32)           # (1, T)

    # Time-major 2D input (tiny wrapper copy; keeps all in-kernel slices static 2D).
    x_tm = jnp.transpose(input_seq, (1, 0, 2)).reshape(S * B, F)

    vmem = pl.BlockSpec(memory_space=pltpu.MemorySpace.VMEM)
    return pl.pallas_call(
        seq2seq_cnn_kernel,
        out_shape=jax.ShapeDtypeStruct((B, output_size), f32),
        in_specs=[vmem] * 14,
        out_specs=vmem,
    )(x_tm, h0, c0, wenc, benc, e_whh_t, wd0, wd1, d_whh_t, bd0,
      wdcomb, bdcomb, wblock, blast)


# ---------------------------------------------------------------------------
# Pure-JAX reference (mirrors the PyTorch module step by step)
# ---------------------------------------------------------------------------
def reference_forward(params, input_seq, h0, c0, output_size):
    B, S, F = input_seq.shape
    H = h0.shape[-1]

    # Conv1d(F, F, kernel_size=3, padding=1) over the sequence axis (batch-first).
    xp = jnp.pad(input_seq, ((0, 0), (1, 1), (0, 0)))                     # (B, S+2, F)
    conv = params["b_conv"] + sum(
        xp[:, k:k + S, :] @ params["w_conv"][:, :, k].T for k in range(3))  # (B,S,F)

    def cell(x, h, c, wih, whh, b):
        g = x @ wih.T + h @ whh.T + b
        i = jax.nn.sigmoid(g[:, :H]); f = jax.nn.sigmoid(g[:, H:2 * H])
        gg = jnp.tanh(g[:, 2 * H:3 * H]); o = jax.nn.sigmoid(g[:, 3 * H:])
        c_new = f * c + i * gg
        return o * jnp.tanh(c_new), c_new

    h, c = h0, c0
    for s in range(S):
        h, c = cell(conv[:, s, :], h, c,
                    params["enc_wih"], params["enc_whh"], params["enc_b"])

    dec_in = conv[:, -1, :]
    outs = []
    for _ in range(output_size):
        h, c = cell(dec_in, h, c,
                    params["dec_wih"], params["dec_whh"], params["dec_b"])
        pred = h @ params["w_out"].T + params["b_out"]                    # (B, F)
        outs.append(pred)
        dec_in = pred
    return jnp.stack(outs, axis=0)[:, :, -1].T                            # (B, T)


# ---------------------------------------------------------------------------
# Deterministic parameter init (shapes implied by the module's __init__)
# ---------------------------------------------------------------------------
def init_params(key, F, H, K=3):
    ks = jax.random.split(key, 12)

    def u(k, shape, fan_in):
        bound = 1.0 / np.sqrt(fan_in)
        return jax.random.uniform(k, shape, jnp.float32, -bound, bound)

    p = {}
    # Conv1d(F, F, kernel_size=K, padding=K//2)
    p["w_conv"] = u(ks[0], (F, F, K), F * K)
    p["b_conv"] = u(ks[1], (F,), F * K)
    # Encoder LSTM (num_layers=1)
    p["enc_wih"] = u(ks[2], (4 * H, F), H)
    p["enc_whh"] = u(ks[3], (4 * H, H), H)
    p["enc_b"] = u(ks[4], (4 * H,), H) + u(ks[5], (4 * H,), H)            # b_ih + b_hh
    # Decoder LSTM (num_layers=1)
    p["dec_wih"] = u(ks[6], (4 * H, F), H)
    p["dec_whh"] = u(ks[7], (4 * H, H), H)
    p["dec_b"] = u(ks[8], (4 * H,), H) + u(ks[9], (4 * H,), H)
    # Decoder output head: Linear(hidden_size -> input_feature_len)
    p["w_out"] = u(ks[10], (F, H), H)
    p["b_out"] = u(ks[11], (F,), H)
    return p


if __name__ == "__main__":
    # input_feature_len=8, hidden_size=32, num_layers=1, output_size=4, kernel_size=3
    B, S, F, H, T = 2, 8, 8, 32, 4

    key = jax.random.PRNGKey(0)
    kp, kx, kh, kc = jax.random.split(key, 4)
    params = init_params(kp, F, H)
    input_seq = jax.random.normal(kx, (B, S, F), jnp.float32)
    # the module's torch.randn h_0 / c_0, made deterministic (num_layers=1 -> (B, H))
    h0 = jax.random.normal(kh, (B, H), jnp.float32)
    c0 = jax.random.normal(kc, (B, H), jnp.float32)

    out = seq2seq_forward(params, input_seq, h0, c0, output_size=T)
    out = jax.block_until_ready(out)
    assert out.shape == (B, T), out.shape

    ref = reference_forward(params, input_seq, h0, c0, T)
    np.testing.assert_allclose(np.asarray(out), np.asarray(ref), rtol=5e-3, atol=5e-3)
    print("KERNEL_OK")
</pallas_src>

<mosaic_0001>
module attributes {stable_mosaic.version = 11 : i64} {
  func.func @seq2seq_cnn_kernel(%arg0: memref<16x8xf32, #tpu.memory_space<vmem>>, %arg1: memref<2x32xf32, #tpu.memory_space<vmem>>, %arg2: memref<2x32xf32, #tpu.memory_space<vmem>>, %arg3: memref<8x384xf32, #tpu.memory_space<vmem>>, %arg4: memref<1x128xf32, #tpu.memory_space<vmem>>, %arg5: memref<32x128xf32, #tpu.memory_space<vmem>>, %arg6: memref<8x128xf32, #tpu.memory_space<vmem>>, %arg7: memref<8x128xf32, #tpu.memory_space<vmem>>, %arg8: memref<32x128xf32, #tpu.memory_space<vmem>>, %arg9: memref<1x128xf32, #tpu.memory_space<vmem>>, %arg10: memref<32x128xf32, #tpu.memory_space<vmem>>, %arg11: memref<1x128xf32, #tpu.memory_space<vmem>>, %arg12: memref<128x4xf32, #tpu.memory_space<vmem>>, %arg13: memref<1x4xf32, #tpu.memory_space<vmem>>, %arg14: memref<2x4xf32, #tpu.memory_space<vmem>>) attributes {dimension_semantics = [], scalar_prefetch = 0 : i64, scratch_operands = 0 : i64, tpu.core_type = #tpu.core_type<tc>} {
    %c0 = arith.constant 0 : index
    %c0_0 = arith.constant 0 : index
    %0 = vector.load %arg0[%c0, %c0_0] : memref<16x8xf32, #tpu.memory_space<vmem>>, vector<16x8xf32>
    %c0_1 = arith.constant 0 : index
    %c0_2 = arith.constant 0 : index
    %1 = vector.load %arg3[%c0_1, %c0_2] : memref<8x384xf32, #tpu.memory_space<vmem>>, vector<8x384xf32>
    %cst = arith.constant dense<0.000000e+00> : vector<16x384xf32>
    %2 = tpu.matmul %0, %1, %cst {dimension_numbers = #tpu.dot_dimension_numbers<[1], [0], [0], [1], [0, 0, 1, 1], [], []>} : vector<16x8xf32>, vector<8x384xf32>, vector<16x384xf32> -> vector<16x384xf32>
    %c0_3 = arith.constant 0 : index
    %c0_4 = arith.constant 0 : index
    %3 = vector.load %arg4[%c0_3, %c0_4] : memref<1x128xf32, #tpu.memory_space<vmem>>, vector<1x128xf32>
    %4 = vector.extract_strided_slice %2 {offsets = [0, 128], sizes = [2, 128], strides = [1, 1]} : vector<16x384xf32> to vector<2x128xf32>
    %5 = vector.broadcast %3 : vector<1x128xf32> to vector<2x128xf32>
    %6 = arith.addf %4, %5 : vector<2x128xf32>
    %7 = vector.extract_strided_slice %2 {offsets = [2, 256], sizes = [2, 128], strides = [1, 1]} : vector<16x384xf32> to vector<2x128xf32>
    %8 = arith.addf %6, %7 : vector<2x128xf32>
    %9 = vector.extract_strided_slice %2 {offsets = [2, 128], sizes = [2, 128], strides = [1, 1]} : vector<16x384xf32> to vector<2x128xf32>
    %10 = vector.broadcast %3 : vector<1x128xf32> to vector<2x128xf32>
    %11 = arith.addf %9, %10 : vector<2x128xf32>
    %12 = vector.extract_strided_slice %2 {offsets = [0, 0], sizes = [2, 128], strides = [1, 1]} : vector<16x384xf32> to vector<2x128xf32>
    %13 = arith.addf %11, %12 : vector<2x128xf32>
    %14 = vector.extract_strided_slice %2 {offsets = [4, 256], sizes = [2, 128], strides = [1, 1]} : vector<16x384xf32> to vector<2x128xf32>
    %15 = arith.addf %13, %14 : vector<2x128xf32>
    %16 = vector.extract_strided_slice %2 {offsets = [4, 128], sizes = [2, 128], strides = [1, 1]} : vector<16x384xf32> to vector<2x128xf32>
    %17 = vector.broadcast %3 : vector<1x128xf32> to vector<2x128xf32>
    %18 = arith.addf %16, %17 : vector<2x128xf32>
    %19 = vector.extract_strided_slice %2 {offsets = [2, 0], sizes = [2, 128], strides = [1, 1]} : vector<16x384xf32> to vector<2x128xf32>
    %20 = arith.addf %18, %19 : vector<2x128xf32>
    %21 = vector.extract_strided_slice %2 {offsets = [6, 256], sizes = [2, 128], strides = [1, 1]} : vector<16x384xf32> to vector<2x128xf32>
    %22 = arith.addf %20, %21 : vector<2x128xf32>
    %23 = vector.extract_strided_slice %2 {offsets = [6, 128], sizes = [2, 128], strides = [1, 1]} : vector<16x384xf32> to vector<2x128xf32>
    %24 = vector.broadcast %3 : vector<1x128xf32> to vector<2x128xf32>
    %25 = arith.addf %23, %24 : vector<2x128xf32>
    %26 = vector.extract_strided_slice %2 {offsets = [4, 0], sizes = [2, 128], strides = [1, 1]} : vector<16x384xf32> to vector<2x128xf32>
    %27 = arith.addf %25, %26 : vector<2x128xf32>
    %28 = vector.extract_strided_slice %2 {offsets = [8, 256], sizes = [2, 128], strides = [1, 1]} : vector<16x384xf32> to vector<2x128xf32>
    %29 = arith.addf %27, %28 : vector<2x128xf32>
    %30 = vector.extract_strided_slice %2 {offsets = [8, 128], sizes = [2, 128], strides = [1, 1]} : vector<16x384xf32> to vector<2x128xf32>
    %31 = vector.broadcast %3 : vector<1x128xf32> to vector<2x128xf32>
    %32 = arith.addf %30, %31 : vector<2x128xf32>
    %33 = vector.extract_strided_slice %2 {offsets = [6, 0], sizes = [2, 128], strides = [1, 1]} : vector<16x384xf32> to vector<2x128xf32>
    %34 = arith.addf %32, %33 : vector<2x128xf32>
    %35 = vector.extract_strided_slice %2 {offsets = [10, 256], sizes = [2, 128], strides = [1, 1]} : vector<16x384xf32> to vector<2x128xf32>
    %36 = arith.addf %34, %35 : vector<2x128xf32>
    %37 = vector.extract_strided_slice %2 {offsets = [10, 128], sizes = [2, 128], strides = [1, 1]} : vector<16x384xf32> to vector<2x128xf32>
    %38 = vector.broadcast %3 : vector<1x128xf32> to vector<2x128xf32>
    %39 = arith.addf %37, %38 : vector<2x128xf32>
    %40 = vector.extract_strided_slice %2 {offsets = [8, 0], sizes = [2, 128], strides = [1, 1]} : vector<16x384xf32> to vector<2x128xf32>
    %41 = arith.addf %39, %40 : vector<2x128xf32>
    %42 = vector.extract_strided_slice %2 {offsets = [12, 256], sizes = [2, 128], strides = [1, 1]} : vector<16x384xf32> to vector<2x128xf32>
    %43 = arith.addf %41, %42 : vector<2x128xf32>
    %44 = vector.extract_strided_slice %2 {offsets = [12, 128], sizes = [2, 128], strides = [1, 1]} : vector<16x384xf32> to vector<2x128xf32>
    %45 = vector.broadcast %3 : vector<1x128xf32> to vector<2x128xf32>
    %46 = arith.addf %44, %45 : vector<2x128xf32>
    %47 = vector.extract_strided_slice %2 {offsets = [10, 0], sizes = [2, 128], strides = [1, 1]} : vector<16x384xf32> to vector<2x128xf32>
    %48 = arith.addf %46, %47 : vector<2x128xf32>
    %49 = vector.extract_strided_slice %2 {offsets = [14, 256], sizes = [2, 128], strides = [1, 1]} : vector<16x384xf32> to vector<2x128xf32>
    %50 = arith.addf %48, %49 : vector<2x128xf32>
    %51 = vector.extract_strided_slice %2 {offsets = [14, 128], sizes = [2, 128], strides = [1, 1]} : vector<16x384xf32> to vector<2x128xf32>
    %52 = vector.broadcast %3 : vector<1x128xf32> to vector<2x128xf32>
    %53 = arith.addf %51, %52 : vector<2x128xf32>
    %54 = vector.extract_strided_slice %2 {offsets = [12, 0], sizes = [2, 128], strides = [1, 1]} : vector<16x384xf32> to vector<2x128xf32>
    %55 = arith.addf %53, %54 : vector<2x128xf32>
    %56 = vector.extract_strided_slice %0 {offsets = [14, 0], sizes = [2, 8], strides = [1, 1]} : vector<16x8xf32> to vector<2x8xf32>
    %c0_5 = arith.constant 0 : index
    %c0_6 = arith.constant 0 : index
    %57 = vector.load %arg7[%c0_5, %c0_6] : memref<8x128xf32, #tpu.memory_space<vmem>>, vector<8x128xf32>
    %cst_7 = arith.constant dense<0.000000e+00> : vector<2x128xf32>
    %58 = tpu.matmul %56, %57, %cst_7 {dimension_numbers = #tpu.dot_dimension_numbers<[1], [0], [0], [1], [0, 0, 1, 1], [], []>} : vector<2x8xf32>, vector<8x128xf32>, vector<2x128xf32> -> vector<2x128xf32>
    %c0_8 = arith.constant 0 : index
    %c0_9 = arith.constant 0 : index
    %59 = vector.load %arg9[%c0_8, %c0_9] : memref<1x128xf32, #tpu.memory_space<vmem>>, vector<1x128xf32>
    %60 = vector.broadcast %59 : vector<1x128xf32> to vector<2x128xf32>
    %61 = arith.addf %58, %60 : vector<2x128xf32>
    %62 = vector.extract_strided_slice %0 {offsets = [12, 0], sizes = [2, 8], strides = [1, 1]} : vector<16x8xf32> to vector<2x8xf32>
    %c0_10 = arith.constant 0 : index
    %c0_11 = arith.constant 0 : index
    %63 = vector.load %arg6[%c0_10, %c0_11] : memref<8x128xf32, #tpu.memory_space<vmem>>, vector<8x128xf32>
    %cst_12 = arith.constant dense<0.000000e+00> : vector<2x128xf32>
    %64 = tpu.matmul %62, %63, %cst_12 {dimension_numbers = #tpu.dot_dimension_numbers<[1], [0], [0], [1], [0, 0, 1, 1], [], []>} : vector<2x8xf32>, vector<8x128xf32>, vector<2x128xf32> -> vector<2x128xf32>
    %65 = arith.addf %61, %64 : vector<2x128xf32>
    %c0_13 = arith.constant 0 : index
    %c0_14 = arith.constant 0 : index
    %66 = vector.load %arg5[%c0_13, %c0_14] : memref<32x128xf32, #tpu.memory_space<vmem>>, vector<32x128xf32>
    %c0_15 = arith.constant 0 : index
    %c0_16 = arith.constant 0 : index
    %67 = vector.load %arg1[%c0_15, %c0_16] : memref<2x32xf32, #tpu.memory_space<vmem>>, vector<2x32xf32>
    %c0_17 = arith.constant 0 : index
    %c0_18 = arith.constant 0 : index
    %68 = vector.load %arg2[%c0_17, %c0_18] : memref<2x32xf32, #tpu.memory_space<vmem>>, vector<2x32xf32>
    %cst_19 = arith.constant dense<0.000000e+00> : vector<2x128xf32>
    %69 = tpu.matmul %67, %66, %cst_19 {dimension_numbers = #tpu.dot_dimension_numbers<[1], [0], [0], [1], [0, 0, 1, 1], [], []>} : vector<2x32xf32>, vector<32x128xf32>, vector<2x128xf32> -> vector<2x128xf32>
    %70 = arith.addf %8, %69 : vector<2x128xf32>
    %71 = vector.extract_strided_slice %70 {offsets = [0, 0], sizes = [2, 32], strides = [1, 1]} : vector<2x128xf32> to vector<2x32xf32>
    %72 = arith.negf %71 : vector<2x32xf32>
    %73 = math.exp %72 : vector<2x32xf32>
    %cst_20 = arith.constant 1.000000e+00 : f32
    %74 = vector.broadcast %cst_20 : f32 to vector<2x32xf32>
    %75 = arith.addf %74, %73 : vector<2x32xf32>
    %76 = arith.divf %74, %75 : vector<2x32xf32>
    %77 = vector.extract_strided_slice %70 {offsets = [0, 32], sizes = [2, 32], strides = [1, 1]} : vector<2x128xf32> to vector<2x32xf32>
    %78 = arith.negf %77 : vector<2x32xf32>
    %79 = math.exp %78 : vector<2x32xf32>
    %cst_21 = arith.constant 1.000000e+00 : f32
    %80 = vector.broadcast %cst_21 : f32 to vector<2x32xf32>
    %81 = arith.addf %80, %79 : vector<2x32xf32>
    %82 = arith.divf %80, %81 : vector<2x32xf32>
    %83 = vector.extract_strided_slice %70 {offsets = [0, 64], sizes = [2, 32], strides = [1, 1]} : vector<2x128xf32> to vector<2x32xf32>
    %84 = math.tanh %83 : vector<2x32xf32>
    %85 = vector.extract_strided_slice %70 {offsets = [0, 96], sizes = [2, 32], strides = [1, 1]} : vector<2x128xf32> to vector<2x32xf32>
    %86 = arith.negf %85 : vector<2x32xf32>
    %87 = math.exp %86 : vector<2x32xf32>
    %cst_22 = arith.constant 1.000000e+00 : f32
    %88 = vector.broadcast %cst_22 : f32 to vector<2x32xf32>
    %89 = arith.addf %88, %87 : vector<2x32xf32>
    %90 = arith.divf %88, %89 : vector<2x32xf32>
    %91 = arith.mulf %82, %68 : vector<2x32xf32>
    %92 = arith.mulf %76, %84 : vector<2x32xf32>
    %93 = arith.addf %91, %92 : vector<2x32xf32>
    %94 = math.tanh %93 : vector<2x32xf32>
    %95 = arith.mulf %90, %94 : vector<2x32xf32>
    %cst_23 = arith.constant dense<0.000000e+00> : vector<2x128xf32>
    %96 = tpu.matmul %95, %66, %cst_23 {dimension_numbers = #tpu.dot_dimension_numbers<[1], [0], [0], [1], [0, 0, 1, 1], [], []>} : vector<2x32xf32>, vector<32x128xf32>, vector<2x128xf32> -> vector<2x128xf32>
    %97 = arith.addf %15, %96 : vector<2x128xf32>
    %98 = vector.extract_strided_slice %97 {offsets = [0, 0], sizes = [2, 32], strides = [1, 1]} : vector<2x128xf32> to vector<2x32xf32>
    %99 = arith.negf %98 : vector<2x32xf32>
    %100 = math.exp %99 : vector<2x32xf32>
    %cst_24 = arith.constant 1.000000e+00 : f32
    %101 = vector.broadcast %cst_24 : f32 to vector<2x32xf32>
    %102 = arith.addf %101, %100 : vector<2x32xf32>
    %103 = arith.divf %101, %102 : vector<2x32xf32>
    %104 = vector.extract_strided_slice %97 {offsets = [0, 32], sizes = [2, 32], strides = [1, 1]} : vector<2x128xf32> to vector<2x32xf32>
    %105 = arith.negf %104 : vector<2x32xf32>
    %106 = math.exp %105 : vector<2x32xf32>
    %cst_25 = arith.constant 1.000000e+00 : f32
    %107 = vector.broadcast %cst_25 : f32 to vector<2x32xf32>
    %108 = arith.addf %107, %106 : vector<2x32xf32>
    %109 = arith.divf %107, %108 : vector<2x32xf32>
    %110 = vector.extract_strided_slice %97 {offsets = [0, 64], sizes = [2, 32], strides = [1, 1]} : vector<2x128xf32> to vector<2x32xf32>
    %111 = math.tanh %110 : vector<2x32xf32>
    %112 = vector.extract_strided_slice %97 {offsets = [0, 96], sizes = [2, 32], strides = [1, 1]} : vector<2x128xf32> to vector<2x32xf32>
    %113 = arith.negf %112 : vector<2x32xf32>
    %114 = math.exp %113 : vector<2x32xf32>
    %cst_26 = arith.constant 1.000000e+00 : f32
    %115 = vector.broadcast %cst_26 : f32 to vector<2x32xf32>
    %116 = arith.addf %115, %114 : vector<2x32xf32>
    %117 = arith.divf %115, %116 : vector<2x32xf32>
    %118 = arith.mulf %109, %93 : vector<2x32xf32>
    %119 = arith.mulf %103, %111 : vector<2x32xf32>
    %120 = arith.addf %118, %119 : vector<2x32xf32>
    %121 = math.tanh %120 : vector<2x32xf32>
    %122 = arith.mulf %117, %121 : vector<2x32xf32>
    %cst_27 = arith.constant dense<0.000000e+00> : vector<2x128xf32>
    %123 = tpu.matmul %122, %66, %cst_27 {dimension_numbers = #tpu.dot_dimension_numbers<[1], [0], [0], [1], [0, 0, 1, 1], [], []>} : vector<2x32xf32>, vector<32x128xf32>, vector<2x128xf32> -> vector<2x128xf32>
    %124 = arith.addf %22, %123 : vector<2x128xf32>
    %125 = vector.extract_strided_slice %124 {offsets = [0, 0], sizes = [2, 32], strides = [1, 1]} : vector<2x128xf32> to vector<2x32xf32>
    %126 = arith.negf %125 : vector<2x32xf32>
    %127 = math.exp %126 : vector<2x32xf32>
    %cst_28 = arith.constant 1.000000e+00 : f32
    %128 = vector.broadcast %cst_28 : f32 to vector<2x32xf32>
    %129 = arith.addf %128, %127 : vector<2x32xf32>
    %130 = arith.divf %128, %129 : vector<2x32xf32>
    %131 = vector.extract_strided_slice %124 {offsets = [0, 32], sizes = [2, 32], strides = [1, 1]} : vector<2x128xf32> to vector<2x32xf32>
    %132 = arith.negf %131 : vector<2x32xf32>
    %133 = math.exp %132 : vector<2x32xf32>
    %cst_29 = arith.constant 1.000000e+00 : f32
    %134 = vector.broadcast %cst_29 : f32 to vector<2x32xf32>
    %135 = arith.addf %134, %133 : vector<2x32xf32>
    %136 = arith.divf %134, %135 : vector<2x32xf32>
    %137 = vector.extract_strided_slice %124 {offsets = [0, 64], sizes = [2, 32], strides = [1, 1]} : vector<2x128xf32> to vector<2x32xf32>
    %138 = math.tanh %137 : vector<2x32xf32>
    %139 = vector.extract_strided_slice %124 {offsets = [0, 96], sizes = [2, 32], strides = [1, 1]} : vector<2x128xf32> to vector<2x32xf32>
    %140 = arith.negf %139 : vector<2x32xf32>
    %141 = math.exp %140 : vector<2x32xf32>
    %cst_30 = arith.constant 1.000000e+00 : f32
    %142 = vector.broadcast %cst_30 : f32 to vector<2x32xf32>
    %143 = arith.addf %142, %141 : vector<2x32xf32>
    %144 = arith.divf %142, %143 : vector<2x32xf32>
    %145 = arith.mulf %136, %120 : vector<2x32xf32>
    %146 = arith.mulf %130, %138 : vector<2x32xf32>
    %147 = arith.addf %145, %146 : vector<2x32xf32>
    %148 = math.tanh %147 : vector<2x32xf32>
    %149 = arith.mulf %144, %148 : vector<2x32xf32>
    %cst_31 = arith.constant dense<0.000000e+00> : vector<2x128xf32>
    %150 = tpu.matmul %149, %66, %cst_31 {dimension_numbers = #tpu.dot_dimension_numbers<[1], [0], [0], [1], [0, 0, 1, 1], [], []>} : vector<2x32xf32>, vector<32x128xf32>, vector<2x128xf32> -> vector<2x128xf32>
    %151 = arith.addf %29, %150 : vector<2x128xf32>
    %152 = vector.extract_strided_slice %151 {offsets = [0, 0], sizes = [2, 32], strides = [1, 1]} : vector<2x128xf32> to vector<2x32xf32>
    %153 = arith.negf %152 : vector<2x32xf32>
    %154 = math.exp %153 : vector<2x32xf32>
    %cst_32 = arith.constant 1.000000e+00 : f32
    %155 = vector.broadcast %cst_32 : f32 to vector<2x32xf32>
    %156 = arith.addf %155, %154 : vector<2x32xf32>
    %157 = arith.divf %155, %156 : vector<2x32xf32>
    %158 = vector.extract_strided_slice %151 {offsets = [0, 32], sizes = [2, 32], strides = [1, 1]} : vector<2x128xf32> to vector<2x32xf32>
    %159 = arith.negf %158 : vector<2x32xf32>
    %160 = math.exp %159 : vector<2x32xf32>
    %cst_33 = arith.constant 1.000000e+00 : f32
    %161 = vector.broadcast %cst_33 : f32 to vector<2x32xf32>
    %162 = arith.addf %161, %160 : vector<2x32xf32>
    %163 = arith.divf %161, %162 : vector<2x32xf32>
    %164 = vector.extract_strided_slice %151 {offsets = [0, 64], sizes = [2, 32], strides = [1, 1]} : vector<2x128xf32> to vector<2x32xf32>
    %165 = math.tanh %164 : vector<2x32xf32>
    %166 = vector.extract_strided_slice %151 {offsets = [0, 96], sizes = [2, 32], strides = [1, 1]} : vector<2x128xf32> to vector<2x32xf32>
    %167 = arith.negf %166 : vector<2x32xf32>
    %168 = math.exp %167 : vector<2x32xf32>
    %cst_34 = arith.constant 1.000000e+00 : f32
    %169 = vector.broadcast %cst_34 : f32 to vector<2x32xf32>
    %170 = arith.addf %169, %168 : vector<2x32xf32>
    %171 = arith.divf %169, %170 : vector<2x32xf32>
    %172 = arith.mulf %163, %147 : vector<2x32xf32>
    %173 = arith.mulf %157, %165 : vector<2x32xf32>
    %174 = arith.addf %172, %173 : vector<2x32xf32>
    %175 = math.tanh %174 : vector<2x32xf32>
    %176 = arith.mulf %171, %175 : vector<2x32xf32>
    %cst_35 = arith.constant dense<0.000000e+00> : vector<2x128xf32>
    %177 = tpu.matmul %176, %66, %cst_35 {dimension_numbers = #tpu.dot_dimension_numbers<[1], [0], [0], [1], [0, 0, 1, 1], [], []>} : vector<2x32xf32>, vector<32x128xf32>, vector<2x128xf32> -> vector<2x128xf32>
    %178 = arith.addf %36, %177 : vector<2x128xf32>
    %179 = vector.extract_strided_slice %178 {offsets = [0, 0], sizes = [2, 32], strides = [1, 1]} : vector<2x128xf32> to vector<2x32xf32>
    %180 = arith.negf %179 : vector<2x32xf32>
    %181 = math.exp %180 : vector<2x32xf32>
    %cst_36 = arith.constant 1.000000e+00 : f32
    %182 = vector.broadcast %cst_36 : f32 to vector<2x32xf32>
    %183 = arith.addf %182, %181 : vector<2x32xf32>
    %184 = arith.divf %182, %183 : vector<2x32xf32>
    %185 = vector.extract_strided_slice %178 {offsets = [0, 32], sizes = [2, 32], strides = [1, 1]} : vector<2x128xf32> to vector<2x32xf32>
    %186 = arith.negf %185 : vector<2x32xf32>
    %187 = math.exp %186 : vector<2x32xf32>
    %cst_37 = arith.constant 1.000000e+00 : f32
    %188 = vector.broadcast %cst_37 : f32 to vector<2x32xf32>
    %189 = arith.addf %188, %187 : vector<2x32xf32>
    %190 = arith.divf %188, %189 : vector<2x32xf32>
    %191 = vector.extract_strided_slice %178 {offsets = [0, 64], sizes = [2, 32], strides = [1, 1]} : vector<2x128xf32> to vector<2x32xf32>
    %192 = math.tanh %191 : vector<2x32xf32>
    %193 = vector.extract_strided_slice %178 {offsets = [0, 96], sizes = [2, 32], strides = [1, 1]} : vector<2x128xf32> to vector<2x32xf32>
    %194 = arith.negf %193 : vector<2x32xf32>
    %195 = math.exp %194 : vector<2x32xf32>
    %cst_38 = arith.constant 1.000000e+00 : f32
    %196 = vector.broadcast %cst_38 : f32 to vector<2x32xf32>
    %197 = arith.addf %196, %195 : vector<2x32xf32>
    %198 = arith.divf %196, %197 : vector<2x32xf32>
    %199 = arith.mulf %190, %174 : vector<2x32xf32>
    %200 = arith.mulf %184, %192 : vector<2x32xf32>
    %201 = arith.addf %199, %200 : vector<2x32xf32>
    %202 = math.tanh %201 : vector<2x32xf32>
    %203 = arith.mulf %198, %202 : vector<2x32xf32>
    %cst_39 = arith.constant dense<0.000000e+00> : vector<2x128xf32>
    %204 = tpu.matmul %203, %66, %cst_39 {dimension_numbers = #tpu.dot_dimension_numbers<[1], [0], [0], [1], [0, 0, 1, 1], [], []>} : vector<2x32xf32>, vector<32x128xf32>, vector<2x128xf32> -> vector<2x128xf32>
    %205 = arith.addf %43, %204 : vector<2x128xf32>
    %206 = vector.extract_strided_slice %205 {offsets = [0, 0], sizes = [2, 32], strides = [1, 1]} : vector<2x128xf32> to vector<2x32xf32>
    %207 = arith.negf %206 : vector<2x32xf32>
    %208 = math.exp %207 : vector<2x32xf32>
    %cst_40 = arith.constant 1.000000e+00 : f32
    %209 = vector.broadcast %cst_40 : f32 to vector<2x32xf32>
    %210 = arith.addf %209, %208 : vector<2x32xf32>
    %211 = arith.divf %209, %210 : vector<2x32xf32>
    %212 = vector.extract_strided_slice %205 {offsets = [0, 32], sizes = [2, 32], strides = [1, 1]} : vector<2x128xf32> to vector<2x32xf32>
    %213 = arith.negf %212 : vector<2x32xf32>
    %214 = math.exp %213 : vector<2x32xf32>
    %cst_41 = arith.constant 1.000000e+00 : f32
    %215 = vector.broadcast %cst_41 : f32 to vector<2x32xf32>
    %216 = arith.addf %215, %214 : vector<2x32xf32>
    %217 = arith.divf %215, %216 : vector<2x32xf32>
    %218 = vector.extract_strided_slice %205 {offsets = [0, 64], sizes = [2, 32], strides = [1, 1]} : vector<2x128xf32> to vector<2x32xf32>
    %219 = math.tanh %218 : vector<2x32xf32>
    %220 = vector.extract_strided_slice %205 {offsets = [0, 96], sizes = [2, 32], strides = [1, 1]} : vector<2x128xf32> to vector<2x32xf32>
    %221 = arith.negf %220 : vector<2x32xf32>
    %222 = math.exp %221 : vector<2x32xf32>
    %cst_42 = arith.constant 1.000000e+00 : f32
    %223 = vector.broadcast %cst_42 : f32 to vector<2x32xf32>
    %224 = arith.addf %223, %222 : vector<2x32xf32>
    %225 = arith.divf %223, %224 : vector<2x32xf32>
    %226 = arith.mulf %217, %201 : vector<2x32xf32>
    %227 = arith.mulf %211, %219 : vector<2x32xf32>
    %228 = arith.addf %226, %227 : vector<2x32xf32>
    %229 = math.tanh %228 : vector<2x32xf32>
    %230 = arith.mulf %225, %229 : vector<2x32xf32>
    %cst_43 = arith.constant dense<0.000000e+00> : vector<2x128xf32>
    %231 = tpu.matmul %230, %66, %cst_43 {dimension_numbers = #tpu.dot_dimension_numbers<[1], [0], [0], [1], [0, 0, 1, 1], [], []>} : vector<2x32xf32>, vector<32x128xf32>, vector<2x128xf32> -> vector<2x128xf32>
    %232 = arith.addf %50, %231 : vector<2x128xf32>
    %233 = vector.extract_strided_slice %232 {offsets = [0, 0], sizes = [2, 32], strides = [1, 1]} : vector<2x128xf32> to vector<2x32xf32>
    %234 = arith.negf %233 : vector<2x32xf32>
    %235 = math.exp %234 : vector<2x32xf32>
    %cst_44 = arith.constant 1.000000e+00 : f32
    %236 = vector.broadcast %cst_44 : f32 to vector<2x32xf32>
    %237 = arith.addf %236, %235 : vector<2x32xf32>
    %238 = arith.divf %236, %237 : vector<2x32xf32>
    %239 = vector.extract_strided_slice %232 {offsets = [0, 32], sizes = [2, 32], strides = [1, 1]} : vector<2x128xf32> to vector<2x32xf32>
    %240 = arith.negf %239 : vector<2x32xf32>
    %241 = math.exp %240 : vector<2x32xf32>
    %cst_45 = arith.constant 1.000000e+00 : f32
    %242 = vector.broadcast %cst_45 : f32 to vector<2x32xf32>
    %243 = arith.addf %242, %241 : vector<2x32xf32>
    %244 = arith.divf %242, %243 : vector<2x32xf32>
    %245 = vector.extract_strided_slice %232 {offsets = [0, 64], sizes = [2, 32], strides = [1, 1]} : vector<2x128xf32> to vector<2x32xf32>
    %246 = math.tanh %245 : vector<2x32xf32>
    %247 = vector.extract_strided_slice %232 {offsets = [0, 96], sizes = [2, 32], strides = [1, 1]} : vector<2x128xf32> to vector<2x32xf32>
    %248 = arith.negf %247 : vector<2x32xf32>
    %249 = math.exp %248 : vector<2x32xf32>
    %cst_46 = arith.constant 1.000000e+00 : f32
    %250 = vector.broadcast %cst_46 : f32 to vector<2x32xf32>
    %251 = arith.addf %250, %249 : vector<2x32xf32>
    %252 = arith.divf %250, %251 : vector<2x32xf32>
    %253 = arith.mulf %244, %228 : vector<2x32xf32>
    %254 = arith.mulf %238, %246 : vector<2x32xf32>
    %255 = arith.addf %253, %254 : vector<2x32xf32>
    %256 = math.tanh %255 : vector<2x32xf32>
    %257 = arith.mulf %252, %256 : vector<2x32xf32>
    %cst_47 = arith.constant dense<0.000000e+00> : vector<2x128xf32>
    %258 = tpu.matmul %257, %66, %cst_47 {dimension_numbers = #tpu.dot_dimension_numbers<[1], [0], [0], [1], [0, 0, 1, 1], [], []>} : vector<2x32xf32>, vector<32x128xf32>, vector<2x128xf32> -> vector<2x128xf32>
    %259 = arith.addf %55, %258 : vector<2x128xf32>
    %260 = vector.extract_strided_slice %259 {offsets = [0, 0], sizes = [2, 32], strides = [1, 1]} : vector<2x128xf32> to vector<2x32xf32>
    %261 = arith.negf %260 : vector<2x32xf32>
    %262 = math.exp %261 : vector<2x32xf32>
    %cst_48 = arith.constant 1.000000e+00 : f32
    %263 = vector.broadcast %cst_48 : f32 to vector<2x32xf32>
    %264 = arith.addf %263, %262 : vector<2x32xf32>
    %265 = arith.divf %263, %264 : vector<2x32xf32>
    %266 = vector.extract_strided_slice %259 {offsets = [0, 32], sizes = [2, 32], strides = [1, 1]} : vector<2x128xf32> to vector<2x32xf32>
    %267 = arith.negf %266 : vector<2x32xf32>
    %268 = math.exp %267 : vector<2x32xf32>
    %cst_49 = arith.constant 1.000000e+00 : f32
    %269 = vector.broadcast %cst_49 : f32 to vector<2x32xf32>
    %270 = arith.addf %269, %268 : vector<2x32xf32>
    %271 = arith.divf %269, %270 : vector<2x32xf32>
    %272 = vector.extract_strided_slice %259 {offsets = [0, 64], sizes = [2, 32], strides = [1, 1]} : vector<2x128xf32> to vector<2x32xf32>
    %273 = math.tanh %272 : vector<2x32xf32>
    %274 = vector.extract_strided_slice %259 {offsets = [0, 96], sizes = [2, 32], strides = [1, 1]} : vector<2x128xf32> to vector<2x32xf32>
    %275 = arith.negf %274 : vector<2x32xf32>
    %276 = math.exp %275 : vector<2x32xf32>
    %cst_50 = arith.constant 1.000000e+00 : f32
    %277 = vector.broadcast %cst_50 : f32 to vector<2x32xf32>
    %278 = arith.addf %277, %276 : vector<2x32xf32>
    %279 = arith.divf %277, %278 : vector<2x32xf32>
    %280 = arith.mulf %271, %255 : vector<2x32xf32>
    %281 = arith.mulf %265, %273 : vector<2x32xf32>
    %282 = arith.addf %280, %281 : vector<2x32xf32>
    %283 = math.tanh %282 : vector<2x32xf32>
    %284 = arith.mulf %279, %283 : vector<2x32xf32>
    %c0_51 = arith.constant 0 : index
    %c0_52 = arith.constant 0 : index
    %285 = vector.load %arg8[%c0_51, %c0_52] : memref<32x128xf32, #tpu.memory_space<vmem>>, vector<32x128xf32>
    %cst_53 = arith.constant dense<0.000000e+00> : vector<2x128xf32>
    %286 = tpu.matmul %284, %285, %cst_53 {dimension_numbers = #tpu.dot_dimension_numbers<[1], [0], [0], [1], [0, 0, 1, 1], [], []>} : vector<2x32xf32>, vector<32x128xf32>, vector<2x128xf32> -> vector<2x128xf32>
    %287 = arith.addf %65, %286 : vector<2x128xf32>
    %288 = vector.extract_strided_slice %287 {offsets = [0, 0], sizes = [2, 32], strides = [1, 1]} : vector<2x128xf32> to vector<2x32xf32>
    %289 = arith.negf %288 : vector<2x32xf32>
    %290 = math.exp %289 : vector<2x32xf32>
    %cst_54 = arith.constant 1.000000e+00 : f32
    %291 = vector.broadcast %cst_54 : f32 to vector<2x32xf32>
    %292 = arith.addf %291, %290 : vector<2x32xf32>
    %293 = arith.divf %291, %292 : vector<2x32xf32>
    %294 = vector.extract_strided_slice %287 {offsets = [0, 32], sizes = [2, 32], strides = [1, 1]} : vector<2x128xf32> to vector<2x32xf32>
    %295 = arith.negf %294 : vector<2x32xf32>
    %296 = math.exp %295 : vector<2x32xf32>
    %cst_55 = arith.constant 1.000000e+00 : f32
    %297 = vector.broadcast %cst_55 : f32 to vector<2x32xf32>
    %298 = arith.addf %297, %296 : vector<2x32xf32>
    %299 = arith.divf %297, %298 : vector<2x32xf32>
    %300 = vector.extract_strided_slice %287 {offsets = [0, 64], sizes = [2, 32], strides = [1, 1]} : vector<2x128xf32> to vector<2x32xf32>
    %301 = math.tanh %300 : vector<2x32xf32>
    %302 = vector.extract_strided_slice %287 {offsets = [0, 96], sizes = [2, 32], strides = [1, 1]} : vector<2x128xf32> to vector<2x32xf32>
    %303 = arith.negf %302 : vector<2x32xf32>
    %304 = math.exp %303 : vector<2x32xf32>
    %cst_56 = arith.constant 1.000000e+00 : f32
    %305 = vector.broadcast %cst_56 : f32 to vector<2x32xf32>
    %306 = arith.addf %305, %304 : vector<2x32xf32>
    %307 = arith.divf %305, %306 : vector<2x32xf32>
    %308 = arith.mulf %299, %282 : vector<2x32xf32>
    %309 = arith.mulf %293, %301 : vector<2x32xf32>
    %310 = arith.addf %308, %309 : vector<2x32xf32>
    %311 = math.tanh %310 : vector<2x32xf32>
    %312 = arith.mulf %307, %311 : vector<2x32xf32>
    %c0_57 = arith.constant 0 : index
    %c0_58 = arith.constant 0 : index
    %313 = vector.load %arg10[%c0_57, %c0_58] : memref<32x128xf32, #tpu.memory_space<vmem>>, vector<32x128xf32>
    %c0_59 = arith.constant 0 : index
    %c0_60 = arith.constant 0 : index
    %314 = vector.load %arg11[%c0_59, %c0_60] : memref<1x128xf32, #tpu.memory_space<vmem>>, vector<1x128xf32>
    %cst_61 = arith.constant dense<0.000000e+00> : vector<2x128xf32>
    %315 = tpu.matmul %312, %313, %cst_61 {dimension_numbers = #tpu.dot_dimension_numbers<[1], [0], [0], [1], [0, 0, 1, 1], [], []>} : vector<2x32xf32>, vector<32x128xf32>, vector<2x128xf32> -> vector<2x128xf32>
    %316 = vector.broadcast %314 : vector<1x128xf32> to vector<2x128xf32>
    %317 = arith.addf %315, %316 : vector<2x128xf32>
    %318 = vector.extract_strided_slice %317 {offsets = [0, 0], sizes = [2, 32], strides = [1, 1]} : vector<2x128xf32> to vector<2x32xf32>
    %319 = arith.negf %318 : vector<2x32xf32>
    %320 = math.exp %319 : vector<2x32xf32>
    %cst_62 = arith.constant 1.000000e+00 : f32
    %321 = vector.broadcast %cst_62 : f32 to vector<2x32xf32>
    %322 = arith.addf %321, %320 : vector<2x32xf32>
    %323 = arith.divf %321, %322 : vector<2x32xf32>
    %324 = vector.extract_strided_slice %317 {offsets = [0, 32], sizes = [2, 32], strides = [1, 1]} : vector<2x128xf32> to vector<2x32xf32>
    %325 = arith.negf %324 : vector<2x32xf32>
    %326 = math.exp %325 : vector<2x32xf32>
    %cst_63 = arith.constant 1.000000e+00 : f32
    %327 = vector.broadcast %cst_63 : f32 to vector<2x32xf32>
    %328 = arith.addf %327, %326 : vector<2x32xf32>
    %329 = arith.divf %327, %328 : vector<2x32xf32>
    %330 = vector.extract_strided_slice %317 {offsets = [0, 64], sizes = [2, 32], strides = [1, 1]} : vector<2x128xf32> to vector<2x32xf32>
    %331 = math.tanh %330 : vector<2x32xf32>
    %332 = vector.extract_strided_slice %317 {offsets = [0, 96], sizes = [2, 32], strides = [1, 1]} : vector<2x128xf32> to vector<2x32xf32>
    %333 = arith.negf %332 : vector<2x32xf32>
    %334 = math.exp %333 : vector<2x32xf32>
    %cst_64 = arith.constant 1.000000e+00 : f32
    %335 = vector.broadcast %cst_64 : f32 to vector<2x32xf32>
    %336 = arith.addf %335, %334 : vector<2x32xf32>
    %337 = arith.divf %335, %336 : vector<2x32xf32>
    %338 = arith.mulf %329, %310 : vector<2x32xf32>
    %339 = arith.mulf %323, %331 : vector<2x32xf32>
    %340 = arith.addf %338, %339 : vector<2x32xf32>
    %341 = math.tanh %340 : vector<2x32xf32>
    %342 = arith.mulf %337, %341 : vector<2x32xf32>
    %cst_65 = arith.constant dense<0.000000e+00> : vector<2x128xf32>
    %343 = tpu.matmul %342, %313, %cst_65 {dimension_numbers = #tpu.dot_dimension_numbers<[1], [0], [0], [1], [0, 0, 1, 1], [], []>} : vector<2x32xf32>, vector<32x128xf32>, vector<2x128xf32> -> vector<2x128xf32>
    %344 = vector.broadcast %314 : vector<1x128xf32> to vector<2x128xf32>
    %345 = arith.addf %343, %344 : vector<2x128xf32>
    %346 = vector.extract_strided_slice %345 {offsets = [0, 0], sizes = [2, 32], strides = [1, 1]} : vector<2x128xf32> to vector<2x32xf32>
    %347 = arith.negf %346 : vector<2x32xf32>
    %348 = math.exp %347 : vector<2x32xf32>
    %cst_66 = arith.constant 1.000000e+00 : f32
    %349 = vector.broadcast %cst_66 : f32 to vector<2x32xf32>
    %350 = arith.addf %349, %348 : vector<2x32xf32>
    %351 = arith.divf %349, %350 : vector<2x32xf32>
    %352 = vector.extract_strided_slice %345 {offsets = [0, 32], sizes = [2, 32], strides = [1, 1]} : vector<2x128xf32> to vector<2x32xf32>
    %353 = arith.negf %352 : vector<2x32xf32>
    %354 = math.exp %353 : vector<2x32xf32>
    %cst_67 = arith.constant 1.000000e+00 : f32
    %355 = vector.broadcast %cst_67 : f32 to vector<2x32xf32>
    %356 = arith.addf %355, %354 : vector<2x32xf32>
    %357 = arith.divf %355, %356 : vector<2x32xf32>
    %358 = vector.extract_strided_slice %345 {offsets = [0, 64], sizes = [2, 32], strides = [1, 1]} : vector<2x128xf32> to vector<2x32xf32>
    %359 = math.tanh %358 : vector<2x32xf32>
    %360 = vector.extract_strided_slice %345 {offsets = [0, 96], sizes = [2, 32], strides = [1, 1]} : vector<2x128xf32> to vector<2x32xf32>
    %361 = arith.negf %360 : vector<2x32xf32>
    %362 = math.exp %361 : vector<2x32xf32>
    %cst_68 = arith.constant 1.000000e+00 : f32
    %363 = vector.broadcast %cst_68 : f32 to vector<2x32xf32>
    %364 = arith.addf %363, %362 : vector<2x32xf32>
    %365 = arith.divf %363, %364 : vector<2x32xf32>
    %366 = arith.mulf %357, %340 : vector<2x32xf32>
    %367 = arith.mulf %351, %359 : vector<2x32xf32>
    %368 = arith.addf %366, %367 : vector<2x32xf32>
    %369 = math.tanh %368 : vector<2x32xf32>
    %370 = arith.mulf %365, %369 : vector<2x32xf32>
    %cst_69 = arith.constant dense<0.000000e+00> : vector<2x128xf32>
    %371 = tpu.matmul %370, %313, %cst_69 {dimension_numbers = #tpu.dot_dimension_numbers<[1], [0], [0], [1], [0, 0, 1, 1], [], []>} : vector<2x32xf32>, vector<32x128xf32>, vector<2x128xf32> -> vector<2x128xf32>
    %372 = vector.broadcast %314 : vector<1x128xf32> to vector<2x128xf32>
    %373 = arith.addf %371, %372 : vector<2x128xf32>
    %374 = vector.extract_strided_slice %373 {offsets = [0, 0], sizes = [2, 32], strides = [1, 1]} : vector<2x128xf32> to vector<2x32xf32>
    %375 = arith.negf %374 : vector<2x32xf32>
    %376 = math.exp %375 : vector<2x32xf32>
    %cst_70 = arith.constant 1.000000e+00 : f32
    %377 = vector.broadcast %cst_70 : f32 to vector<2x32xf32>
    %378 = arith.addf %377, %376 : vector<2x32xf32>
    %379 = arith.divf %377, %378 : vector<2x32xf32>
    %380 = vector.extract_strided_slice %373 {offsets = [0, 32], sizes = [2, 32], strides = [1, 1]} : vector<2x128xf32> to vector<2x32xf32>
    %381 = arith.negf %380 : vector<2x32xf32>
    %382 = math.exp %381 : vector<2x32xf32>
    %cst_71 = arith.constant 1.000000e+00 : f32
    %383 = vector.broadcast %cst_71 : f32 to vector<2x32xf32>
    %384 = arith.addf %383, %382 : vector<2x32xf32>
    %385 = arith.divf %383, %384 : vector<2x32xf32>
    %386 = vector.extract_strided_slice %373 {offsets = [0, 64], sizes = [2, 32], strides = [1, 1]} : vector<2x128xf32> to vector<2x32xf32>
    %387 = math.tanh %386 : vector<2x32xf32>
    %388 = vector.extract_strided_slice %373 {offsets = [0, 96], sizes = [2, 32], strides = [1, 1]} : vector<2x128xf32> to vector<2x32xf32>
    %389 = arith.negf %388 : vector<2x32xf32>
    %390 = math.exp %389 : vector<2x32xf32>
    %cst_72 = arith.constant 1.000000e+00 : f32
    %391 = vector.broadcast %cst_72 : f32 to vector<2x32xf32>
    %392 = arith.addf %391, %390 : vector<2x32xf32>
    %393 = arith.divf %391, %392 : vector<2x32xf32>
    %394 = arith.mulf %385, %368 : vector<2x32xf32>
    %395 = arith.mulf %379, %387 : vector<2x32xf32>
    %396 = arith.addf %394, %395 : vector<2x32xf32>
    %397 = math.tanh %396 : vector<2x32xf32>
    %398 = arith.mulf %393, %397 : vector<2x32xf32>
    %399 = tpu.concatenate %312, %342, %370, %398 in 1 : vector<2x32xf32>, vector<2x32xf32>, vector<2x32xf32>, vector<2x32xf32> -> vector<2x128xf32>
    %c0_73 = arith.constant 0 : index
    %c0_74 = arith.constant 0 : index
    %400 = vector.load %arg12[%c0_73, %c0_74] : memref<128x4xf32, #tpu.memory_space<vmem>>, vector<128x4xf32>
    %cst_75 = arith.constant dense<0.000000e+00> : vector<2x4xf32>
    %401 = tpu.matmul %399, %400, %cst_75 {dimension_numbers = #tpu.dot_dimension_numbers<[1], [0], [0], [1], [0, 0, 1, 1], [], []>} : vector<2x128xf32>, vector<128x4xf32>, vector<2x4xf32> -> vector<2x4xf32>
    %c0_76 = arith.constant 0 : index
    %c0_77 = arith.constant 0 : index
    %402 = vector.load %arg13[%c0_76, %c0_77] : memref<1x4xf32, #tpu.memory_space<vmem>>, vector<1x4xf32>
    %403 = vector.broadcast %402 : vector<1x4xf32> to vector<2x4xf32>
    %404 = arith.addf %401, %403 : vector<2x4xf32>
    %c0_78 = arith.constant 0 : index
    %c0_79 = arith.constant 0 : index
    %405 = vector.load %arg14[%c0_78, %c0_79] : memref<2x4xf32, #tpu.memory_space<vmem>>, vector<2x4xf32>
    tpu.vector_store %arg14[%c0_78, %c0_79], %404 {strides = array<i32>} : memref<2x4xf32, #tpu.memory_space<vmem>>, vector<2x4xf32>,
    return
  }
}

</mosaic_0001>

<llo_original>
// kernel: seq2seq_forward.1
$region0: #{seq2seq_forward.1}
  #allocation0 [shape = 'u32[]', space=smem, size = 0x4, offset = 0x4, fixed_abs, tag = 'smem constant byte address 0x4 - core index']
  #allocation1 [shape = 'u32[144,128]{1,0:T(1,128)}', space=vmem, size = 0x12000, scoped, tag = 'internal scratch']
  %s0 = inlined_call_operand.vmem [shape: f32[16,8], index: 0, kind: input, shape index: {}]
  %s1 = inlined_call_operand.vmem [shape: f32[2,32], index: 1, kind: input, shape index: {}]
  %s2 = inlined_call_operand.vmem [shape: f32[2,32], index: 2, kind: input, shape index: {}]
  %s3 = inlined_call_operand.vmem [shape: f32[8,384], index: 3, kind: input, shape index: {}]
  %s4 = inlined_call_operand.vmem [shape: f32[1,128], index: 4, kind: input, shape index: {}]
  %s5 = inlined_call_operand.vmem [shape: f32[32,128], index: 5, kind: input, shape index: {}]
  %s6 = inlined_call_operand.vmem [shape: f32[8,128], index: 6, kind: input, shape index: {}]
  %s7 = inlined_call_operand.vmem [shape: f32[8,128], index: 7, kind: input, shape index: {}]
  %s8 = inlined_call_operand.vmem [shape: f32[32,128], index: 8, kind: input, shape index: {}]
  %s9 = inlined_call_operand.vmem [shape: f32[1,128], index: 9, kind: input, shape index: {}]
  %s10 = inlined_call_operand.vmem [shape: f32[32,128], index: 10, kind: input, shape index: {}]
  %s11 = inlined_call_operand.vmem [shape: f32[1,128], index: 11, kind: input, shape index: {}]
  %s12 = inlined_call_operand.vmem [shape: f32[128,4], index: 12, kind: input, shape index: {}]
  %s13 = inlined_call_operand.vmem [shape: f32[1,4], index: 13, kind: input, shape index: {}]
  %s14 = inlined_call_operand.hbm [shape: f32[2,4], index: 14, kind: output, shape index: {}]
  %s15 = sld [smem:[#allocation0]]
  $region66: #{seq2seq_forward.1} parent=0
    _
  %s17 = ssub.s32 1, %s15
  %s18 = scalar_select 0, %s17, %s15
  $region1: #{seq2seq_forward.1} parent=0
    #allocation2 [shape = 'u8[1024]{0}', space=vmem, size = 0x400, scoped, tag = 'output window, operand 0, single buffered']
    #allocation3 [shape = 's32[1]{0}', space=sflag, size = 0x4, scoped, tag = 'scoped memory for seq2seq_forward.1']
    %19 = vsyncpa [#allocation3], 0
    // Predicated region
    $region2: #{seq2seq_forward.1} parent=1 // pred_check
      _
    $region3: #{seq2seq_forward.1} parent=1 // pred_check_branch
      %21 = sbr.rel (0) target = $region5
    $region4: #{seq2seq_forward.1} parent=1 // pred_region
      _
    $region5: #{seq2seq_forward.1} parent=1 // pred_fallthru
      _
    // Predicated region
    $region6: #{seq2seq_forward.1} parent=1 // pred_check
      _
    $region7: #{seq2seq_forward.1} parent=1 // pred_check_branch
      %23 = sbr.rel (0) target = $region9
    $region8: #{seq2seq_forward.1} parent=1 // pred_region
      _
    $region9: #{seq2seq_forward.1} parent=1 // pred_fallthru
      _
    // Predicated region
    $region10: #{seq2seq_forward.1} parent=1 // pred_check
      _
    $region11: #{seq2seq_forward.1} parent=1 // pred_check_branch
      %25 = sbr.rel (0) target = $region13
    $region12: #{seq2seq_forward.1} parent=1 // pred_region
      _
    $region13: #{seq2seq_forward.1} parent=1 // pred_fallthru
      _
    // Predicated region
    $region14: #{seq2seq_forward.1} parent=1 // pred_check
      _
    $region15: #{seq2seq_forward.1} parent=1 // pred_check_branch
      %27 = sbr.rel (0) target = $region17
    $region16: #{seq2seq_forward.1} parent=1 // pred_region
      _
    $region17: #{seq2seq_forward.1} parent=1 // pred_fallthru
      _
    // Predicated region
    $region18: #{seq2seq_forward.1} parent=1 // pred_check
      _
    $region19: #{seq2seq_forward.1} parent=1 // pred_check_branch
      %29 = sbr.rel (0) target = $region21
    $region20: #{seq2seq_forward.1} parent=1 // pred_region
      _
    $region21: #{seq2seq_forward.1} parent=1 // pred_fallthru
      _
    // Predicated region
    $region22: #{seq2seq_forward.1} parent=1 // pred_check
      _
    $region23: #{seq2seq_forward.1} parent=1 // pred_check_branch
      %31 = sbr.rel (0) target = $region25
    $region24: #{seq2seq_forward.1} parent=1 // pred_region
      _
    $region25: #{seq2seq_forward.1} parent=1 // pred_fallthru
      _
    // Predicated region
    $region26: #{seq2seq_forward.1} parent=1 // pred_check
      _
    $region27: #{seq2seq_forward.1} parent=1 // pred_check_branch
      %33 = sbr.rel (0) target = $region29
    $region28: #{seq2seq_forward.1} parent=1 // pred_region
      _
    $region29: #{seq2seq_forward.1} parent=1 // pred_fallthru
      _
    // Predicated region
    $region30: #{seq2seq_forward.1} parent=1 // pred_check
      _
    $region31: #{seq2seq_forward.1} parent=1 // pred_check_branch
      %35 = sbr.rel (0) target = $region33
    $region32: #{seq2seq_forward.1} parent=1 // pred_region
      _
    $region33: #{seq2seq_forward.1} parent=1 // pred_fallthru
      _
    // Predicated region
    $region34: #{seq2seq_forward.1} parent=1 // pred_check
      _
    $region35: #{seq2seq_forward.1} parent=1 // pred_check_branch
      %37 = sbr.rel (0) target = $region37
    $region36: #{seq2seq_forward.1} parent=1 // pred_region
      _
    $region37: #{seq2seq_forward.1} parent=1 // pred_fallthru
      _
    // Predicated region
    $region38: #{seq2seq_forward.1} parent=1 // pred_check
      _
    $region39: #{seq2seq_forward.1} parent=1 // pred_check_branch
      %39 = sbr.rel (0) target = $region41
    $region40: #{seq2seq_forward.1} parent=1 // pred_region
      _
    $region41: #{seq2seq_forward.1} parent=1 // pred_fallthru
      _
    // Predicated region
    $region42: #{seq2seq_forward.1} parent=1 // pred_check
      _
    $region43: #{seq2seq_forward.1} parent=1 // pred_check_branch
      %41 = sbr.rel (0) target = $region45
    $region44: #{seq2seq_forward.1} parent=1 // pred_region
      _
    $region45: #{seq2seq_forward.1} parent=1 // pred_fallthru
      _
    // Predicated region
    $region46: #{seq2seq_forward.1} parent=1 // pred_check
      _
    $region47: #{seq2seq_forward.1} parent=1 // pred_check_branch
      %43 = sbr.rel (0) target = $region49
    $region48: #{seq2seq_forward.1} parent=1 // pred_region
      _
    $region49: #{seq2seq_forward.1} parent=1 // pred_fallthru
      _
    // Predicated region
    $region50: #{seq2seq_forward.1} parent=1 // pred_check
      _
    $region51: #{seq2seq_forward.1} parent=1 // pred_check_branch
      %45 = sbr.rel (0) target = $region53
    $region52: #{seq2seq_forward.1} parent=1 // pred_region
      _
    $region53: #{seq2seq_forward.1} parent=1 // pred_fallthru
      _
    // Predicated region
    $region54: #{seq2seq_forward.1} parent=1 // pred_check
      _
    $region55: #{seq2seq_forward.1} parent=1 // pred_check_branch
      %47 = sbr.rel (0) target = $region57
    $region56: #{seq2seq_forward.1} parent=1 // pred_region
      _
    $region57: #{seq2seq_forward.1} parent=1 // pred_fallthru
      _
    %v48 = vld [vmem:[%s0] sm:$0xff]
    %v49 = vld [vmem:[%s0 + $0x8] sm:$0xff]
    %v50 = vld [vmem:[%s3] sm:$0xff]
    %v51 = vld [vmem:[%s3 + $0x8] sm:$0xff]
    %v52 = vld [vmem:[%s3 + $0x10] sm:$0xff]
    %vm53 = vcmask 64512
    %v55 = vsel %vm53, %v48, 0
    %v58 = vsel %vm53, %v49, 0
    %60 = vmatprep.subr.mxu0 0.0
    %61 = vmatpush1.msra.mxu0 0.0
    %62 = vmatprep.subr.mxu0 0.0
    %63 = vmatpush1.msra.mxu0 0.0
    %64 = vmatprep.subr.mxu0 0.0
    %65 = vmatpush1.msra.mxu0 0.0
    %66 = vmatprep.subr.mxu0 0.0
    %67 = vmatpush1.msra.mxu0 0.0
    %68 = vmatprep.subr.mxu0 0.0
    %69 = vmatpush1.msra.mxu0 0.0
    %70 = vmatprep.subr.mxu0 0.0
    %71 = vmatpush1.msra.mxu0 0.0
    %72 = vmatprep.subr.mxu0 0.0
    %73 = vmatpush1.msra.mxu0 0.0
    %74 = vmatprep.subr.mxu0 0.0
    %75 = vmatpush1.msra.mxu0 0.0
    %76 = vmatprep.subr.mxu0 0.0
    %77 = vmatpush1.msra.mxu0 0.0
    %78 = vmatprep.subr.mxu0 0.0
    %79 = vmatpush1.msra.mxu0 0.0
    %80 = vmatprep.subr.mxu0 0.0
    %81 = vmatpush1.msra.mxu0 0.0
    %82 = vmatprep.subr.mxu0 0.0
    %83 = vmatpush1.msra.mxu0 0.0
    %84 = vmatprep.subr.mxu0 0.0
    %85 = vmatpush1.msra.mxu0 0.0
    %86 = vmatprep.subr.mxu0 0.0
    %87 = vmatpush1.msra.mxu0 0.0
    %88 = vmatprep.subr.mxu0 0.0
    %89 = vmatpush1.msra.mxu0 0.0
    %90 = vmatprep.subr.mxu0 %v51
    %91 = vmatpush1.msra.mxu0 %v50
    %92 = vmatprep.subr.mxu0 0.0
    %93 = vmatpush2.msra.mxu0 0.0
    %94 = vmatprep.subr.mxu0 0.0
    %95 = vmatpush2.msra.mxu0 0.0
    %96 = vmatprep.subr.mxu0 0.0
    %97 = vmatpush2.msra.mxu0 0.0
    %98 = vmatprep.subr.mxu0 0.0
    %99 = vmatpush2.msra.mxu0 0.0
    %100 = vmatprep.subr.mxu0 0.0
    %101 = vmatpush2.msra.mxu0 0.0
    %102 = vmatprep.subr.mxu0 0.0
    %103 = vmatpush2.msra.mxu0 0.0
    %104 = vmatprep.subr.mxu0 0.0
    %105 = vmatpush2.msra.mxu0 0.0
    %106 = vmatprep.subr.mxu0 0.0
    %107 = vmatpush2.msra.mxu0 0.0
    %108 = vmatprep.subr.mxu0 0.0
    %109 = vmatpush2.msra.mxu0 0.0
    %110 = vmatprep.subr.mxu0 0.0
    %111 = vmatpush2.msra.mxu0 0.0
    %112 = vmatprep.subr.mxu0 0.0
    %113 = vmatpush2.msra.mxu0 0.0
    %114 = vmatprep.subr.mxu0 0.0
    %115 = vmatpush2.msra.mxu0 0.0
    %116 = vmatprep.subr.mxu0 0.0
    %117 = vmatpush2.msra.mxu0 0.0
    %118 = vmatprep.subr.mxu0 0.0
    %119 = vmatpush2.msra.mxu0 0.0
    %120 = vmatprep.subr.mxu0 0.0
    %121 = vmatpush2.msra.mxu0 0.0
    %122 = vmatprep.subr.mxu0 0.0
    %123 = vmatpush2.msra.mxu0 0.0
    %124 = vmatprep.mubr.f32.mxu0 0.0
    %125 = vmatmul.mubr.f32.gmra.mxu0 %v55
    %v126 = vpop.f32.mrf.mxu0
    %v127 = vadd.f32 0.0, %v126
    %v128 = vpop.f32.mrf.mxu0
    %v129 = vadd.f32 0.0, %v128
    %130 = vmatprep.mubr.f32.mxu0 0.0
    %131 = vmatmul.mubr.f32.gmra.mxu0 %v58
    %v132 = vpop.f32.mrf.mxu0
    %v133 = vadd.f32 0.0, %v132
    %v134 = vpop.f32.mrf.mxu0
    %v135 = vadd.f32 0.0, %v134
    %136 = vdwg.mxu0
    %137 = vmatprep.subr.mxu0 0.0
    %138 = vmatpush1.msra.mxu0 0.0
    %139 = vmatprep.subr.mxu0 0.0
    %140 = vmatpush1.msra.mxu0 0.0
    %141 = vmatprep.subr.mxu0 0.0
    %142 = vmatpush1.msra.mxu0 0.0
    %143 = vmatprep.subr.mxu0 0.0
    %144 = vmatpush1.msra.mxu0 0.0
    %145 = vmatprep.subr.mxu0 0.0
    %146 = vmatpush1.msra.mxu0 0.0
    %147 = vmatprep.subr.mxu0 0.0
    %148 = vmatpush1.msra.mxu0 0.0
    %149 = vmatprep.subr.mxu0 0.0
    %150 = vmatpush1.msra.mxu0 0.0
    %151 = vmatprep.subr.mxu0 0.0
    %152 = vmatpush1.msra.mxu0 0.0
    %153 = vmatprep.subr.mxu0 0.0
    %154 = vmatpush1.msra.mxu0 0.0
    %155 = vmatprep.subr.mxu0 0.0
    %156 = vmatpush1.msra.mxu0 0.0
    %157 = vmatprep.subr.mxu0 0.0
    %158 = vmatpush1.msra.mxu0 0.0
    %159 = vmatprep.subr.mxu0 0.0
    %160 = vmatpush1.msra.mxu0 0.0
    %161 = vmatprep.subr.mxu0 0.0
    %162 = vmatpush1.msra.mxu0 0.0
    %163 = vmatprep.subr.mxu0 0.0
    %164 = vmatpush1.msra.mxu0 0.0
    %165 = vmatprep.subr.mxu0 0.0
    %166 = vmatpush1.msra.mxu0 0.0
    %167 = vmatprep.subr.mxu0 0.0
    %168 = vmatpush1.msra.mxu0 %v52
    %169 = vmatprep.subr.mxu0 0.0
    %170 = vmatpush2.msra.mxu0 0.0
    %171 = vmatprep.subr.mxu0 0.0
    %172 = vmatpush2.msra.mxu0 0.0
    %173 = vmatprep.subr.mxu0 0.0
    %174 = vmatpush2.msra.mxu0 0.0
    %175 = vmatprep.subr.mxu0 0.0
    %176 = vmatpush2.msra.mxu0 0.0
    %177 = vmatprep.subr.mxu0 0.0
    %178 = vmatpush2.msra.mxu0 0.0
    %179 = vmatprep.subr.mxu0 0.0
    %180 = vmatpush2.msra.mxu0 0.0
    %181 = vmatprep.subr.mxu0 0.0
    %182 = vmatpush2.msra.mxu0 0.0
    %183 = vmatprep.subr.mxu0 0.0
    %184 = vmatpush2.msra.mxu0 0.0
    %185 = vmatprep.subr.mxu0 0.0
    %186 = vmatpush2.msra.mxu0 0.0
    %187 = vmatprep.subr.mxu0 0.0
    %188 = vmatpush2.msra.mxu0 0.0
    %189 = vmatprep.subr.mxu0 0.0
    %190 = vmatpush2.msra.mxu0 0.0
    %191 = vmatprep.subr.mxu0 0.0
    %192 = vmatpush2.msra.mxu0 0.0
    %193 = vmatprep.subr.mxu0 0.0
    %194 = vmatpush2.msra.mxu0 0.0
    %195 = vmatprep.subr.mxu0 0.0
    %196 = vmatpush2.msra.mxu0 0.0
    %197 = vmatprep.subr.mxu0 0.0
    %198 = vmatpush2.msra.mxu0 0.0
    %199 = vmatprep.subr.mxu0 0.0
    %200 = vmatpush2.msra.mxu0 0.0
    %201 = vmatprep.mubr.f32.mxu0 0.0
    %202 = vmatmul.mubr.f32.gmra.mxu0 %v55
    %v203 = vpop.f32.mrf.mxu0
    %v204 = vadd.f32 0.0, %v203
    %v205 = vpop.f32.mrf.mxu0
    %206 = vmatprep.mubr.f32.mxu0 0.0
    %207 = vmatmul.mubr.f32.gmra.mxu0 %v58
    %v208 = vpop.f32.mrf.mxu0
    %v209 = vadd.f32 0.0, %v208
    %v210 = vpop.f32.mrf.mxu0
    %211 = vdwg.mxu0
    %v212 = vld [vmem:[%s4] sm:$0x1]
    %v214 = vlaneseq
    %v215 = vshrl.u32 %v214, 7
    %v216 = vsub.s32 0, %v215
    %v217 = vrot.slane %v212, %v216
    %v219 = vadd.f32 %v129, %v217
    %v221 = vrot.slane %v204, 2
    %v223 = vadd.f32 %v219, %v221
    %v225 = vrot.slane %v127, 6
    %v227 = vadd.f32 %v219, %v225
    %v228 = vadd.f32 %v227, %v221
    %v230 = vrot.slane %v209, 2
    %v232 = vadd.f32 %v227, %v230
    %v233 = vadd.f32 %v135, %v217
    %v234 = vadd.f32 %v233, %v225
    %v235 = vadd.f32 %v234, %v230
    %v237 = vrot.slane %v133, 6
    %v239 = vadd.f32 %v233, %v237
    %v240 = vadd.f32 %v239, %v230
    %v241 = vld [vmem:[%s7] sm:$0xff]
    %v242 = vld [vmem:[%s9] sm:$0x1]
    %v244 = vlaneseq
    %v245 = vshrl.u32 %v244, 7
    %v246 = vsub.s32 0, %v245
    %v247 = vrot.slane %v242, %v246
    %v249 = vrot.slane %v49, 6
    %v250 = vsel %vm53, %v249, 0
    %252 = vmatprep.subr.mxu0 0.0
    %253 = vmatpush1.msra.mxu0 0.0
    %254 = vmatprep.subr.mxu0 0.0
    %255 = vmatpush1.msra.mxu0 0.0
    %256 = vmatprep.subr.mxu0 0.0
    %257 = vmatpush1.msra.mxu0 0.0
    %258 = vmatprep.subr.mxu0 0.0
    %259 = vmatpush1.msra.mxu0 0.0
    %260 = vmatprep.subr.mxu0 0.0
    %261 = vmatpush1.msra.mxu0 0.0
    %262 = vmatprep.subr.mxu0 0.0
    %263 = vmatpush1.msra.mxu0 0.0
    %264 = vmatprep.subr.mxu0 0.0
    %265 = vmatpush1.msra.mxu0 0.0
    %266 = vmatprep.subr.mxu0 0.0
    %267 = vmatpush1.msra.mxu0 0.0
    %268 = vmatprep.subr.mxu0 0.0
    %269 = vmatpush1.msra.mxu0 0.0
    %270 = vmatprep.subr.mxu0 0.0
    %271 = vmatpush1.msra.mxu0 0.0
    %272 = vmatprep.subr.mxu0 0.0
    %273 = vmatpush1.msra.mxu0 0.0
    %274 = vmatprep.subr.mxu0 0.0
    %275 = vmatpush1.msra.mxu0 0.0
    %276 = vmatprep.subr.mxu0 0.0
    %277 = vmatpush1.msra.mxu0 0.0
    %278 = vmatprep.subr.mxu0 0.0
    %279 = vmatpush1.msra.mxu0 0.0
    %280 = vmatprep.subr.mxu0 0.0
    %281 = vmatpush1.msra.mxu0 0.0
    %282 = vmatprep.subr.mxu0 0.0
    %283 = vmatpush1.msra.mxu0 %v241
    %284 = vmatprep.subr.mxu0 0.0
    %285 = vmatpush2.msra.mxu0 0.0
    %286 = vmatprep.subr.mxu0 0.0
    %287 = vmatpush2.msra.mxu0 0.0
    %288 = vmatprep.subr.mxu0 0.0
    %289 = vmatpush2.msra.mxu0 0.0
    %290 = vmatprep.subr.mxu0 0.0
    %291 = vmatpush2.msra.mxu0 0.0
    %292 = vmatprep.subr.mxu0 0.0
    %293 = vmatpush2.msra.mxu0 0.0
    %294 = vmatprep.subr.mxu0 0.0
    %295 = vmatpush2.msra.mxu0 0.0
    %296 = vmatprep.subr.mxu0 0.0
    %297 = vmatpush2.msra.mxu0 0.0
    %298 = vmatprep.subr.mxu0 0.0
    %299 = vmatpush2.msra.mxu0 0.0
    %300 = vmatprep.subr.mxu0 0.0
    %301 = vmatpush2.msra.mxu0 0.0
    %302 = vmatprep.subr.mxu0 0.0
    %303 = vmatpush2.msra.mxu0 0.0
    %304 = vmatprep.subr.mxu0 0.0
    %305 = vmatpush2.msra.mxu0 0.0
    %306 = vmatprep.subr.mxu0 0.0
    %307 = vmatpush2.msra.mxu0 0.0
    %308 = vmatprep.subr.mxu0 0.0
    %309 = vmatpush2.msra.mxu0 0.0
    %310 = vmatprep.subr.mxu0 0.0
    %311 = vmatpush2.msra.mxu0 0.0
    %312 = vmatprep.subr.mxu0 0.0
    %313 = vmatpush2.msra.mxu0 0.0
    %314 = vmatprep.subr.mxu0 0.0
    %315 = vmatpush2.msra.mxu0 0.0
    %316 = vmatprep.mubr.f32.mxu0 0.0
    %317 = vmatmul.mubr.f32.gmra.mxu0 %v250
    %v318 = vpop.f32.mrf.mxu0
    %v319 = vadd.f32 %v247, %v318
    %v320 = vpop.f32.mrf.mxu0
    %321 = vdwg.mxu0
    %v322 = vld [vmem:[%s6] sm:$0xff]
    %v323 = vrot.slane %v49, 4
    %v324 = vsel %vm53, %v323, 0
    %326 = vmatprep.subr.mxu0 0.0
    %327 = vmatpush1.msra.mxu0 0.0
    %328 = vmatprep.subr.mxu0 0.0
    %329 = vmatpush1.msra.mxu0 0.0
    %330 = vmatprep.subr.mxu0 0.0
    %331 = vmatpush1.msra.mxu0 0.0
    %332 = vmatprep.subr.mxu0 0.0
    %333 = vmatpush1.msra.mxu0 0.0
    %334 = vmatprep.subr.mxu0 0.0
    %335 = vmatpush1.msra.mxu0 0.0
    %336 = vmatprep.subr.mxu0 0.0
    %337 = vmatpush1.msra.mxu0 0.0
    %338 = vmatprep.subr.mxu0 0.0
    %339 = vmatpush1.msra.mxu0 0.0
    %340 = vmatprep.subr.mxu0 0.0
    %341 = vmatpush1.msra.mxu0 0.0
    %342 = vmatprep.subr.mxu0 0.0
    %343 = vmatpush1.msra.mxu0 0.0
    %344 = vmatprep.subr.mxu0 0.0
    %345 = vmatpush1.msra.mxu0 0.0
    %346 = vmatprep.subr.mxu0 0.0
    %347 = vmatpush1.msra.mxu0 0.0
    %348 = vmatprep.subr.mxu0 0.0
    %349 = vmatpush1.msra.mxu0 0.0
    %350 = vmatprep.subr.mxu0 0.0
    %351 = vmatpush1.msra.mxu0 0.0
    %352 = vmatprep.subr.mxu0 0.0
    %353 = vmatpush1.msra.mxu0 0.0
    %354 = vmatprep.subr.mxu0 0.0
    %355 = vmatpush1.msra.mxu0 0.0
    %356 = vmatprep.subr.mxu0 0.0
    %357 = vmatpush1.msra.mxu0 %v322
    %358 = vmatprep.subr.mxu0 0.0
    %359 = vmatpush2.msra.mxu0 0.0
    %360 = vmatprep.subr.mxu0 0.0
    %361 = vmatpush2.msra.mxu0 0.0
    %362 = vmatprep.subr.mxu0 0.0
    %363 = vmatpush2.msra.mxu0 0.0
    %364 = vmatprep.subr.mxu0 0.0
    %365 = vmatpush2.msra.mxu0 0.0
    %366 = vmatprep.subr.mxu0 0.0
    %367 = vmatpush2.msra.mxu0 0.0
    %368 = vmatprep.subr.mxu0 0.0
    %369 = vmatpush2.msra.mxu0 0.0
    %370 = vmatprep.subr.mxu0 0.0
    %371 = vmatpush2.msra.mxu0 0.0
    %372 = vmatprep.subr.mxu0 0.0
    %373 = vmatpush2.msra.mxu0 0.0
    %374 = vmatprep.subr.mxu0 0.0
    %375 = vmatpush2.msra.mxu0 0.0
    %376 = vmatprep.subr.mxu0 0.0
    %377 = vmatpush2.msra.mxu0 0.0
    %378 = vmatprep.subr.mxu0 0.0
    %379 = vmatpush2.msra.mxu0 0.0
    %380 = vmatprep.subr.mxu0 0.0
    %381 = vmatpush2.msra.mxu0 0.0
    %382 = vmatprep.subr.mxu0 0.0
    %383 = vmatpush2.msra.mxu0 0.0
    %384 = vmatprep.subr.mxu0 0.0
    %385 = vmatpush2.msra.mxu0 0.0
    %386 = vmatprep.subr.mxu0 0.0
    %387 = vmatpush2.msra.mxu0 0.0
    %388 = vmatprep.subr.mxu0 0.0
    %389 = vmatpush2.msra.mxu0 0.0
    %390 = vmatprep.mubr.f32.mxu0 0.0
    %391 = vmatmul.mubr.f32.gmra.mxu0 %v324
    %v392 = vpop.f32.mrf.mxu0
    %v393 = vadd.f32 0.0, %v392
    %v394 = vpop.f32.mrf.mxu0
    %395 = vdwg.mxu0
    %v396 = vadd.f32 %v319, %v393
    %v397 = vld [vmem:[%s5] sm:$0xff]
    %v398 = vld [vmem:[%s5 + $0x8] sm:$0xff]
    %v399 = vld [vmem:[%s5 + $0x10] sm:$0xff]
    %v400 = vld [vmem:[%s5 + $0x18] sm:$0xff]
    %v401 = vld [vmem:[%s1] sm:$0x3]
    %v402 = vld [vmem:[%s2] sm:$0x3]
    %vm403 = vcmask 261120
    %v405 = vsel %vm403, %v401, 0
    %407 = vmatprep.subr.mxu0 0.0
    %408 = vmatpush1.msra.mxu0 0.0
    %409 = vmatprep.subr.mxu0 0.0
    %410 = vmatpush1.msra.mxu0 0.0
    %411 = vmatprep.subr.mxu0 0.0
    %412 = vmatpush1.msra.mxu0 0.0
    %413 = vmatprep.subr.mxu0 0.0
    %414 = vmatpush1.msra.mxu0 0.0
    %415 = vmatprep.subr.mxu0 0.0
    %416 = vmatpush1.msra.mxu0 0.0
    %417 = vmatprep.subr.mxu0 0.0
    %418 = vmatpush1.msra.mxu0 0.0
    %419 = vmatprep.subr.mxu0 0.0
    %420 = vmatpush1.msra.mxu0 0.0
    %421 = vmatprep.subr.mxu0 0.0
    %422 = vmatpush1.msra.mxu0 0.0
    %423 = vmatprep.subr.mxu0 0.0
    %424 = vmatpush1.msra.mxu0 0.0
    %425 = vmatprep.subr.mxu0 0.0
    %426 = vmatpush1.msra.mxu0 0.0
    %427 = vmatprep.subr.mxu0 0.0
    %428 = vmatpush1.msra.mxu0 0.0
    %429 = vmatprep.subr.mxu0 0.0
    %430 = vmatpush1.msra.mxu0 0.0
    %431 = vmatprep.subr.mxu0 0.0
    %432 = vmatpush1.msra.mxu0 %v400
    %433 = vmatprep.subr.mxu0 0.0
    %434 = vmatpush1.msra.mxu0 %v399
    %435 = vmatprep.subr.mxu0 0.0
    %436 = vmatpush1.msra.mxu0 %v398
    %437 = vmatprep.subr.mxu0 0.0
    %438 = vmatpush1.msra.mxu0 %v397
    %439 = vmatprep.subr.mxu0 0.0
    %440 = vmatpush2.msra.mxu0 0.0
    %441 = vmatprep.subr.mxu0 0.0
    %442 = vmatpush2.msra.mxu0 0.0
    %443 = vmatprep.subr.mxu0 0.0
    %444 = vmatpush2.msra.mxu0 0.0
    %445 = vmatprep.subr.mxu0 0.0
    %446 = vmatpush2.msra.mxu0 0.0
    %447 = vmatprep.subr.mxu0 0.0
    %448 = vmatpush2.msra.mxu0 0.0
    %449 = vmatprep.subr.mxu0 0.0
    %450 = vmatpush2.msra.mxu0 0.0
    %451 = vmatprep.subr.mxu0 0.0
    %452 = vmatpush2.msra.mxu0 0.0
    %453 = vmatprep.subr.mxu0 0.0
    %454 = vmatpush2.msra.mxu0 0.0
    %455 = vmatprep.subr.mxu0 0.0
    %456 = vmatpush2.msra.mxu0 0.0
    %457 = vmatprep.subr.mxu0 0.0
    %458 = vmatpush2.msra.mxu0 0.0
    %459 = vmatprep.subr.mxu0 0.0
    %460 = vmatpush2.msra.mxu0 0.0
    %461 = vmatprep.subr.mxu0 0.0
    %462 = vmatpush2.msra.mxu0 0.0
    %463 = vmatprep.subr.mxu0 0.0
    %464 = vmatpush2.msra.mxu0 0.0
    %465 = vmatprep.subr.mxu0 0.0
    %466 = vmatpush2.msra.mxu0 0.0
    %467 = vmatprep.subr.mxu0 0.0
    %468 = vmatpush2.msra.mxu0 0.0
    %469 = vmatprep.subr.mxu0 0.0
    %470 = vmatpush2.msra.mxu0 0.0
    %471 = vmatprep.mubr.f32.mxu0 0.0
    %472 = vmatmul.mubr.f32.gmra.mxu0 %v405
    %v473 = vpop.f32.mrf.mxu0
    %v474 = vadd.f32 0.0, %v473
    %v475 = vpop.f32.mrf.mxu0
    %476 = vdwg.mxu0
    %v477 = vadd.f32 %v223, %v474
    %v478 = vxor.u32 %v477, 2147483648
    %v479 = vmul.f32 %v478, 1.442695
    %v480 = vpow.pop %v479
    %v481 = vadd.f32 %v480, 1.0
    %v482 = vrcp.pop %v481
    %v483 = vmul.f32 1.0, %v482
    %v484 = vtanh.pop %v477
    %486 = vrot.lane.b32.xlu0 %v402, 32
    %v487 = vpop.permute.xlu0 %486
    %v489 = vmul.f32 %v483, %v487
    %491 = vrot.lane.b32.xlu0 %v484, 64
    %v492 = vpop.permute.xlu0 %491
    %v494 = vmul.f32 %v483, %v492
    %496 = vrot.lane.b32.xlu0 %v494, 32
    %v497 = vpop.permute.xlu0 %496
    %v499 = vadd.f32 %v489, %v497
    %v500 = vtanh.pop %v499
    %502 = vrot.lane.b32.xlu0 %v500, 64
    %v503 = vpop.permute.xlu0 %502
    %v505 = vmul.f32 %v483, %v503
    %507 = vrot.lane.b32.xlu0 %v505, 32
    %v508 = vpop.permute.xlu0 %507
    %v509 = vsel %vm403, %v508, 0
    %511 = vmatprep.subr.mxu0 0.0
    %512 = vmatpush1.msra.mxu0 0.0
    %513 = vmatprep.subr.mxu0 0.0
    %514 = vmatpush1.msra.mxu0 0.0
    %515 = vmatprep.subr.mxu0 0.0
    %516 = vmatpush1.msra.mxu0 0.0
    %517 = vmatprep.subr.mxu0 0.0
    %518 = vmatpush1.msra.mxu0 0.0
    %519 = vmatprep.subr.mxu0 0.0
    %520 = vmatpush1.msra.mxu0 0.0
    %521 = vmatprep.subr.mxu0 0.0
    %522 = vmatpush1.msra.mxu0 0.0
    %523 = vmatprep.subr.mxu0 0.0
    %524 = vmatpush1.msra.mxu0 0.0
    %525 = vmatprep.subr.mxu0 0.0
    %526 = vmatpush1.msra.mxu0 0.0
    %527 = vmatprep.subr.mxu0 0.0
    %528 = vmatpush1.msra.mxu0 0.0
    %529 = vmatprep.subr.mxu0 0.0
    %530 = vmatpush1.msra.mxu0 0.0
    %531 = vmatprep.subr.mxu0 0.0
    %532 = vmatpush1.msra.mxu0 0.0
    %533 = vmatprep.subr.mxu0 0.0
    %534 = vmatpush1.msra.mxu0 0.0
    %535 = vmatprep.subr.mxu0 0.0
    %536 = vmatpush1.msra.mxu0 %v400
    %537 = vmatprep.subr.mxu0 0.0
    %538 = vmatpush1.msra.mxu0 %v399
    %539 = vmatprep.subr.mxu0 0.0
    %540 = vmatpush1.msra.mxu0 %v398
    %541 = vmatprep.subr.mxu0 0.0
    %542 = vmatpush1.msra.mxu0 %v397
    %543 = vmatprep.subr.mxu0 0.0
    %544 = vmatpush2.msra.mxu0 0.0
    %545 = vmatprep.subr.mxu0 0.0
    %546 = vmatpush2.msra.mxu0 0.0
    %547 = vmatprep.subr.mxu0 0.0
    %548 = vmatpush2.msra.mxu0 0.0
    %549 = vmatprep.subr.mxu0 0.0
    %550 = vmatpush2.msra.mxu0 0.0
    %551 = vmatprep.subr.mxu0 0.0
    %552 = vmatpush2.msra.mxu0 0.0
    %553 = vmatprep.subr.mxu0 0.0
    %554 = vmatpush2.msra.mxu0 0.0
    %555 = vmatprep.subr.mxu0 0.0
    %556 = vmatpush2.msra.mxu0 0.0
    %557 = vmatprep.subr.mxu0 0.0
    %558 = vmatpush2.msra.mxu0 0.0
    %559 = vmatprep.subr.mxu0 0.0
    %560 = vmatpush2.msra.mxu0 0.0
    %561 = vmatprep.subr.mxu0 0.0
    %562 = vmatpush2.msra.mxu0 0.0
    %563 = vmatprep.subr.mxu0 0.0
    %564 = vmatpush2.msra.mxu0 0.0
    %565 = vmatprep.subr.mxu0 0.0
    %566 = vmatpush2.msra.mxu0 0.0
    %567 = vmatprep.subr.mxu0 0.0
    %568 = vmatpush2.msra.mxu0 0.0
    %569 = vmatprep.subr.mxu0 0.0
    %570 = vmatpush2.msra.mxu0 0.0
    %571 = vmatprep.subr.mxu0 0.0
    %572 = vmatpush2.msra.mxu0 0.0
    %573 = vmatprep.subr.mxu0 0.0
    %574 = vmatpush2.msra.mxu0 0.0
    %575 = vmatprep.mubr.f32.mxu0 0.0
    %576 = vmatmul.mubr.f32.gmra.mxu0 %v509
    %v577 = vpop.f32.mrf.mxu0
    %v578 = vadd.f32 0.0, %v577
    %v579 = vpop.f32.mrf.mxu0
    %580 = vdwg.mxu0
    %v582 = vrot.slane %v578, 6
    %v584 = vadd.f32 %v228, %v582
    %v585 = vxor.u32 %v584, 2147483648
    %v586 = vmul.f32 %v585, 1.442695
    %v587 = vpow.pop %v586
    %v588 = vadd.f32 %v587, 1.0
    %v589 = vrcp.pop %v588
    %v590 = vmul.f32 1.0, %v589
    %v591 = vtanh.pop %v584
    %v593 = vrot.slane %v499, 6
    %v595 = vmul.f32 %v590, %v593
    %597 = vrot.lane.b32.xlu0 %v591, 64
    %v598 = vpop.permute.xlu0 %597
    %v600 = vmul.f32 %v590, %v598
    %602 = vrot.lane.b32.xlu0 %v600, 32
    %v603 = vpop.permute.xlu0 %602
    %v605 = vadd.f32 %v595, %v603
    %v606 = vtanh.pop %v605
    %608 = vrot.lane.b32.xlu0 %v606, 64
    %v609 = vpop.permute.xlu0 %608
    %v611 = vmul.f32 %v590, %v609
    %v613 = vrot.slane %v611, 2
    %614 = vrot.lane.b32.xlu0 %v613, 32
    %v615 = vpop.permute.xlu0 %614
    %v616 = vsel %vm403, %v615, 0
    %618 = vmatprep.subr.mxu0 0.0
    %619 = vmatpush1.msra.mxu0 0.0
    %620 = vmatprep.subr.mxu0 0.0
    %621 = vmatpush1.msra.mxu0 0.0
    %622 = vmatprep.subr.mxu0 0.0
    %623 = vmatpush1.msra.mxu0 0.0
    %624 = vmatprep.subr.mxu0 0.0
    %625 = vmatpush1.msra.mxu0 0.0
    %626 = vmatprep.subr.mxu0 0.0
    %627 = vmatpush1.msra.mxu0 0.0
    %628 = vmatprep.subr.mxu0 0.0
    %629 = vmatpush1.msra.mxu0 0.0
    %630 = vmatprep.subr.mxu0 0.0
    %631 = vmatpush1.msra.mxu0 0.0
    %632 = vmatprep.subr.mxu0 0.0
    %633 = vmatpush1.msra.mxu0 0.0
    %634 = vmatprep.subr.mxu0 0.0
    %635 = vmatpush1.msra.mxu0 0.0
    %636 = vmatprep.subr.mxu0 0.0
    %637 = vmatpush1.msra.mxu0 0.0
    %638 = vmatprep.subr.mxu0 0.0
    %639 = vmatpush1.msra.mxu0 0.0
    %640 = vmatprep.subr.mxu0 0.0
    %641 = vmatpush1.msra.mxu0 0.0
    %642 = vmatprep.subr.mxu0 0.0
    %643 = vmatpush1.msra.mxu0 %v400
    %644 = vmatprep.subr.mxu0 0.0
    %645 = vmatpush1.msra.mxu0 %v399
    %646 = vmatprep.subr.mxu0 0.0
    %647 = vmatpush1.msra.mxu0 %v398
    %648 = vmatprep.subr.mxu0 0.0
    %649 = vmatpush1.msra.mxu0 %v397
    %650 = vmatprep.subr.mxu0 0.0
    %651 = vmatpush2.msra.mxu0 0.0
    %652 = vmatprep.subr.mxu0 0.0
    %653 = vmatpush2.msra.mxu0 0.0
    %654 = vmatprep.subr.mxu0 0.0
    %655 = vmatpush2.msra.mxu0 0.0
    %656 = vmatprep.subr.mxu0 0.0
    %657 = vmatpush2.msra.mxu0 0.0
    %658 = vmatprep.subr.mxu0 0.0
    %659 = vmatpush2.msra.mxu0 0.0
    %660 = vmatprep.subr.mxu0 0.0
    %661 = vmatpush2.msra.mxu0 0.0
    %662 = vmatprep.subr.mxu0 0.0
    %663 = vmatpush2.msra.mxu0 0.0
    %664 = vmatprep.subr.mxu0 0.0
    %665 = vmatpush2.msra.mxu0 0.0
    %666 = vmatprep.subr.mxu0 0.0
    %667 = vmatpush2.msra.mxu0 0.0
    %668 = vmatprep.subr.mxu0 0.0
    %669 = vmatpush2.msra.mxu0 0.0
    %670 = vmatprep.subr.mxu0 0.0
    %671 = vmatpush2.msra.mxu0 0.0
    %672 = vmatprep.subr.mxu0 0.0
    %673 = vmatpush2.msra.mxu0 0.0
    %674 = vmatprep.subr.mxu0 0.0
    %675 = vmatpush2.msra.mxu0 0.0
    %676 = vmatprep.subr.mxu0 0.0
    %677 = vmatpush2.msra.mxu0 0.0
    %678 = vmatprep.subr.mxu0 0.0
    %679 = vmatpush2.msra.mxu0 0.0
    %680 = vmatprep.subr.mxu0 0.0
    %681 = vmatpush2.msra.mxu0 0.0
    %682 = vmatprep.mubr.f32.mxu0 0.0
    %683 = vmatmul.mubr.f32.gmra.mxu0 %v616
    %v684 = vpop.f32.mrf.mxu0
    %v685 = vadd.f32 0.0, %v684
    %v686 = vpop.f32.mrf.mxu0
    %687 = vdwg.mxu0
    %v689 = vrot.slane %v685, 4
    %v691 = vadd.f32 %v228, %v689
    %v692 = vxor.u32 %v691, 2147483648
    %v693 = vmul.f32 %v692, 1.442695
    %v694 = vpow.pop %v693
    %v695 = vadd.f32 %v694, 1.0
    %v696 = vrcp.pop %v695
    %v697 = vmul.f32 1.0, %v696
    %v698 = vtanh.pop %v691
    %v700 = vrot.slane %v605, 6
    %v702 = vmul.f32 %v697, %v700
    %704 = vrot.lane.b32.xlu0 %v698, 64
    %v705 = vpop.permute.xlu0 %704
    %v707 = vmul.f32 %v697, %v705
    %709 = vrot.lane.b32.xlu0 %v707, 32
    %v710 = vpop.permute.xlu0 %709
    %v712 = vadd.f32 %v702, %v710
    %v713 = vtanh.pop %v712
    %715 = vrot.lane.b32.xlu0 %v713, 64
    %v716 = vpop.permute.xlu0 %715
    %v718 = vmul.f32 %v697, %v716
    %v720 = vrot.slane %v718, 4
    %721 = vrot.lane.b32.xlu0 %v720, 32
    %v722 = vpop.permute.xlu0 %721
    %v723 = vsel %vm403, %v722, 0
    %725 = vmatprep.subr.mxu0 0.0
    %726 = vmatpush1.msra.mxu0 0.0
    %727 = vmatprep.subr.mxu0 0.0
    %728 = vmatpush1.msra.mxu0 0.0
    %729 = vmatprep.subr.mxu0 0.0
    %730 = vmatpush1.msra.mxu0 0.0
    %731 = vmatprep.subr.mxu0 0.0
    %732 = vmatpush1.msra.mxu0 0.0
    %733 = vmatprep.subr.mxu0 0.0
    %734 = vmatpush1.msra.mxu0 0.0
    %735 = vmatprep.subr.mxu0 0.0
    %736 = vmatpush1.msra.mxu0 0.0
    %737 = vmatprep.subr.mxu0 0.0
    %738 = vmatpush1.msra.mxu0 0.0
    %739 = vmatprep.subr.mxu0 0.0
    %740 = vmatpush1.msra.mxu0 0.0
    %741 = vmatprep.subr.mxu0 0.0
    %742 = vmatpush1.msra.mxu0 0.0
    %743 = vmatprep.subr.mxu0 0.0
    %744 = vmatpush1.msra.mxu0 0.0
    %745 = vmatprep.subr.mxu0 0.0
    %746 = vmatpush1.msra.mxu0 0.0
    %747 = vmatprep.subr.mxu0 0.0
    %748 = vmatpush1.msra.mxu0 0.0
    %749 = vmatprep.subr.mxu0 0.0
    %750 = vmatpush1.msra.mxu0 %v400
    %751 = vmatprep.subr.mxu0 0.0
    %752 = vmatpush1.msra.mxu0 %v399
    %753 = vmatprep.subr.mxu0 0.0
    %754 = vmatpush1.msra.mxu0 %v398
    %755 = vmatprep.subr.mxu0 0.0
    %756 = vmatpush1.msra.mxu0 %v397
    %757 = vmatprep.subr.mxu0 0.0
    %758 = vmatpush2.msra.mxu0 0.0
    %759 = vmatprep.subr.mxu0 0.0
    %760 = vmatpush2.msra.mxu0 0.0
    %761 = vmatprep.subr.mxu0 0.0
    %762 = vmatpush2.msra.mxu0 0.0
    %763 = vmatprep.subr.mxu0 0.0
    %764 = vmatpush2.msra.mxu0 0.0
    %765 = vmatprep.subr.mxu0 0.0
    %766 = vmatpush2.msra.mxu0 0.0
    %767 = vmatprep.subr.mxu0 0.0
    %768 = vmatpush2.msra.mxu0 0.0
    %769 = vmatprep.subr.mxu0 0.0
    %770 = vmatpush2.msra.mxu0 0.0
    %771 = vmatprep.subr.mxu0 0.0
    %772 = vmatpush2.msra.mxu0 0.0
    %773 = vmatprep.subr.mxu0 0.0
    %774 = vmatpush2.msra.mxu0 0.0
    %775 = vmatprep.subr.mxu0 0.0
    %776 = vmatpush2.msra.mxu0 0.0
    %777 = vmatprep.subr.mxu0 0.0
    %778 = vmatpush2.msra.mxu0 0.0
    %779 = vmatprep.subr.mxu0 0.0
    %780 = vmatpush2.msra.mxu0 0.0
    %781 = vmatprep.subr.mxu0 0.0
    %782 = vmatpush2.msra.mxu0 0.0
    %783 = vmatprep.subr.mxu0 0.0
    %784 = vmatpush2.msra.mxu0 0.0
    %785 = vmatprep.subr.mxu0 0.0
    %786 = vmatpush2.msra.mxu0 0.0
    %787 = vmatprep.subr.mxu0 0.0
    %788 = vmatpush2.msra.mxu0 0.0
    %789 = vmatprep.mubr.f32.mxu0 0.0
    %790 = vmatmul.mubr.f32.gmra.mxu0 %v723
    %v791 = vpop.f32.mrf.mxu0
    %v792 = vadd.f32 0.0, %v791
    %v793 = vpop.f32.mrf.mxu0
    %794 = vdwg.mxu0
    %v796 = vrot.slane %v792, 2
    %v798 = vadd.f32 %v232, %v796
    %v799 = vxor.u32 %v798, 2147483648
    %v800 = vmul.f32 %v799, 1.442695
    %v801 = vpow.pop %v800
    %v802 = vadd.f32 %v801, 1.0
    %v803 = vrcp.pop %v802
    %v804 = vmul.f32 1.0, %v803
    %v805 = vtanh.pop %v798
    %v807 = vrot.slane %v712, 6
    %v809 = vmul.f32 %v804, %v807
    %811 = vrot.lane.b32.xlu0 %v805, 64
    %v812 = vpop.permute.xlu0 %811
    %v814 = vmul.f32 %v804, %v812
    %816 = vrot.lane.b32.xlu0 %v814, 32
    %v817 = vpop.permute.xlu0 %816
    %v819 = vadd.f32 %v809, %v817
    %v820 = vtanh.pop %v819
    %822 = vrot.lane.b32.xlu0 %v820, 64
    %v823 = vpop.permute.xlu0 %822
    %v825 = vmul.f32 %v804, %v823
    %v827 = vrot.slane %v825, 6
    %828 = vrot.lane.b32.xlu0 %v827, 32
    %v829 = vpop.permute.xlu0 %828
    %v830 = vsel %vm403, %v829, 0
    %832 = vmatprep.subr.mxu0 0.0
    %833 = vmatpush1.msra.mxu0 0.0
    %834 = vmatprep.subr.mxu0 0.0
    %835 = vmatpush1.msra.mxu0 0.0
    %836 = vmatprep.subr.mxu0 0.0
    %837 = vmatpush1.msra.mxu0 0.0
    %838 = vmatprep.subr.mxu0 0.0
    %839 = vmatpush1.msra.mxu0 0.0
    %840 = vmatprep.subr.mxu0 0.0
    %841 = vmatpush1.msra.mxu0 0.0
    %842 = vmatprep.subr.mxu0 0.0
    %843 = vmatpush1.msra.mxu0 0.0
    %844 = vmatprep.subr.mxu0 0.0
    %845 = vmatpush1.msra.mxu0 0.0
    %846 = vmatprep.subr.mxu0 0.0
    %847 = vmatpush1.msra.mxu0 0.0
    %848 = vmatprep.subr.mxu0 0.0
    %849 = vmatpush1.msra.mxu0 0.0
    %850 = vmatprep.subr.mxu0 0.0
    %851 = vmatpush1.msra.mxu0 0.0
    %852 = vmatprep.subr.mxu0 0.0
    %853 = vmatpush1.msra.mxu0 0.0
    %854 = vmatprep.subr.mxu0 0.0
    %855 = vmatpush1.msra.mxu0 0.0
    %856 = vmatprep.subr.mxu0 0.0
    %857 = vmatpush1.msra.mxu0 %v400
    %858 = vmatprep.subr.mxu0 0.0
    %859 = vmatpush1.msra.mxu0 %v399
    %860 = vmatprep.subr.mxu0 0.0
    %861 = vmatpush1.msra.mxu0 %v398
    %862 = vmatprep.subr.mxu0 0.0
    %863 = vmatpush1.msra.mxu0 %v397
    %864 = vmatprep.subr.mxu0 0.0
    %865 = vmatpush2.msra.mxu0 0.0
    %866 = vmatprep.subr.mxu0 0.0
    %867 = vmatpush2.msra.mxu0 0.0
    %868 = vmatprep.subr.mxu0 0.0
    %869 = vmatpush2.msra.mxu0 0.0
    %870 = vmatprep.subr.mxu0 0.0
    %871 = vmatpush2.msra.mxu0 0.0
    %872 = vmatprep.subr.mxu0 0.0
    %873 = vmatpush2.msra.mxu0 0.0
    %874 = vmatprep.subr.mxu0 0.0
    %875 = vmatpush2.msra.mxu0 0.0
    %876 = vmatprep.subr.mxu0 0.0
    %877 = vmatpush2.msra.mxu0 0.0
    %878 = vmatprep.subr.mxu0 0.0
    %879 = vmatpush2.msra.mxu0 0.0
    %880 = vmatprep.subr.mxu0 0.0
    %881 = vmatpush2.msra.mxu0 0.0
    %882 = vmatprep.subr.mxu0 0.0
    %883 = vmatpush2.msra.mxu0 0.0
    %884 = vmatprep.subr.mxu0 0.0
    %885 = vmatpush2.msra.mxu0 0.0
    %886 = vmatprep.subr.mxu0 0.0
    %887 = vmatpush2.msra.mxu0 0.0
    %888 = vmatprep.subr.mxu0 0.0
    %889 = vmatpush2.msra.mxu0 0.0
    %890 = vmatprep.subr.mxu0 0.0
    %891 = vmatpush2.msra.mxu0 0.0
    %892 = vmatprep.subr.mxu0 0.0
    %893 = vmatpush2.msra.mxu0 0.0
    %894 = vmatprep.subr.mxu0 0.0
    %895 = vmatpush2.msra.mxu0 0.0
    %896 = vmatprep.mubr.f32.mxu0 0.0
    %897 = vmatmul.mubr.f32.gmra.mxu0 %v830
    %v898 = vpop.f32.mrf.mxu0
    %v899 = vadd.f32 0.0, %v898
    %v900 = vpop.f32.mrf.mxu0
    %901 = vdwg.mxu0
    %v902 = vadd.f32 %v235, %v899
    %v903 = vxor.u32 %v902, 2147483648
    %v904 = vmul.f32 %v903, 1.442695
    %v905 = vpow.pop %v904
    %v906 = vadd.f32 %v905, 1.0
    %v907 = vrcp.pop %v906
    %v908 = vmul.f32 1.0, %v907
    %v909 = vtanh.pop %v902
    %v911 = vrot.slane %v819, 6
    %v913 = vmul.f32 %v908, %v911
    %915 = vrot.lane.b32.xlu0 %v909, 64
    %v916 = vpop.permute.xlu0 %915
    %v918 = vmul.f32 %v908, %v916
    %920 = vrot.lane.b32.xlu0 %v918, 32
    %v921 = vpop.permute.xlu0 %920
    %v923 = vadd.f32 %v913, %v921
    %v924 = vtanh.pop %v923
    %926 = vrot.lane.b32.xlu0 %v924, 64
    %v927 = vpop.permute.xlu0 %926
    %v929 = vmul.f32 %v908, %v927
    %931 = vrot.lane.b32.xlu0 %v929, 32
    %v932 = vpop.permute.xlu0 %931
    %v933 = vsel %vm403, %v932, 0
    %935 = vmatprep.subr.mxu0 0.0
    %936 = vmatpush1.msra.mxu0 0.0
    %937 = vmatprep.subr.mxu0 0.0
    %938 = vmatpush1.msra.mxu0 0.0
    %939 = vmatprep.subr.mxu0 0.0
    %940 = vmatpush1.msra.mxu0 0.0
    %941 = vmatprep.subr.mxu0 0.0
    %942 = vmatpush1.msra.mxu0 0.0
    %943 = vmatprep.subr.mxu0 0.0
    %944 = vmatpush1.msra.mxu0 0.0
    %945 = vmatprep.subr.mxu0 0.0
    %946 = vmatpush1.msra.mxu0 0.0
    %947 = vmatprep.subr.mxu0 0.0
    %948 = vmatpush1.msra.mxu0 0.0
    %949 = vmatprep.subr.mxu0 0.0
    %950 = vmatpush1.msra.mxu0 0.0
    %951 = vmatprep.subr.mxu0 0.0
    %952 = vmatpush1.msra.mxu0 0.0
    %953 = vmatprep.subr.mxu0 0.0
    %954 = vmatpush1.msra.mxu0 0.0
    %955 = vmatprep.subr.mxu0 0.0
    %956 = vmatpush1.msra.mxu0 0.0
    %957 = vmatprep.subr.mxu0 0.0
    %958 = vmatpush1.msra.mxu0 0.0
    %959 = vmatprep.subr.mxu0 0.0
    %960 = vmatpush1.msra.mxu0 %v400
    %961 = vmatprep.subr.mxu0 0.0
    %962 = vmatpush1.msra.mxu0 %v399
    %963 = vmatprep.subr.mxu0 0.0
    %964 = vmatpush1.msra.mxu0 %v398
    %965 = vmatprep.subr.mxu0 0.0
    %966 = vmatpush1.msra.mxu0 %v397
    %967 = vmatprep.subr.mxu0 0.0
    %968 = vmatpush2.msra.mxu0 0.0
    %969 = vmatprep.subr.mxu0 0.0
    %970 = vmatpush2.msra.mxu0 0.0
    %971 = vmatprep.subr.mxu0 0.0
    %972 = vmatpush2.msra.mxu0 0.0
    %973 = vmatprep.subr.mxu0 0.0
    %974 = vmatpush2.msra.mxu0 0.0
    %975 = vmatprep.subr.mxu0 0.0
    %976 = vmatpush2.msra.mxu0 0.0
    %977 = vmatprep.subr.mxu0 0.0
    %978 = vmatpush2.msra.mxu0 0.0
    %979 = vmatprep.subr.mxu0 0.0
    %980 = vmatpush2.msra.mxu0 0.0
    %981 = vmatprep.subr.mxu0 0.0
    %982 = vmatpush2.msra.mxu0 0.0
    %983 = vmatprep.subr.mxu0 0.0
    %984 = vmatpush2.msra.mxu0 0.0
    %985 = vmatprep.subr.mxu0 0.0
    %986 = vmatpush2.msra.mxu0 0.0
    %987 = vmatprep.subr.mxu0 0.0
    %988 = vmatpush2.msra.mxu0 0.0
    %989 = vmatprep.subr.mxu0 0.0
    %990 = vmatpush2.msra.mxu0 0.0
    %991 = vmatprep.subr.mxu0 0.0
    %992 = vmatpush2.msra.mxu0 0.0
    %993 = vmatprep.subr.mxu0 0.0
    %994 = vmatpush2.msra.mxu0 0.0
    %995 = vmatprep.subr.mxu0 0.0
    %996 = vmatpush2.msra.mxu0 0.0
    %997 = vmatprep.subr.mxu0 0.0
    %998 = vmatpush2.msra.mxu0 0.0
    %999 = vmatprep.mubr.f32.mxu0 0.0
    %1000 = vmatmul.mubr.f32.gmra.mxu0 %v933
    %v1001 = vpop.f32.mrf.mxu0
    %v1002 = vadd.f32 0.0, %v1001
    %v1003 = vpop.f32.mrf.mxu0
    %1004 = vdwg.mxu0
    %v1006 = vrot.slane %v1002, 6
    %v1008 = vadd.f32 %v240, %v1006
    %v1009 = vxor.u32 %v1008, 2147483648
    %v1010 = vmul.f32 %v1009, 1.442695
    %v1011 = vpow.pop %v1010
    %v1012 = vadd.f32 %v1011, 1.0
    %v1013 = vrcp.pop %v1012
    %v1014 = vmul.f32 1.0, %v1013
    %v1015 = vtanh.pop %v1008
    %v1017 = vrot.slane %v923, 6
    %v1019 = vmul.f32 %v1014, %v1017
    %1021 = vrot.lane.b32.xlu0 %v1015, 64
    %v1022 = vpop.permute.xlu0 %1021
    %v1024 = vmul.f32 %v1014, %v1022
    %1026 = vrot.lane.b32.xlu0 %v1024, 32
    %v1027 = vpop.permute.xlu0 %1026
    %v1029 = vadd.f32 %v1019, %v1027
    %v1030 = vtanh.pop %v1029
    %1032 = vrot.lane.b32.xlu0 %v1030, 64
    %v1033 = vpop.permute.xlu0 %1032
    %v1035 = vmul.f32 %v1014, %v1033
    %v1037 = vrot.slane %v1035, 2
    %1038 = vrot.lane.b32.xlu0 %v1037, 32
    %v1039 = vpop.permute.xlu0 %1038
    %v1040 = vsel %vm403, %v1039, 0
    %1042 = vmatprep.subr.mxu0 0.0
    %1043 = vmatpush1.msra.mxu0 0.0
    %1044 = vmatprep.subr.mxu0 0.0
    %1045 = vmatpush1.msra.mxu0 0.0
    %1046 = vmatprep.subr.mxu0 0.0
    %1047 = vmatpush1.msra.mxu0 0.0
    %1048 = vmatprep.subr.mxu0 0.0
    %1049 = vmatpush1.msra.mxu0 0.0
    %1050 = vmatprep.subr.mxu0 0.0
    %1051 = vmatpush1.msra.mxu0 0.0
    %1052 = vmatprep.subr.mxu0 0.0
    %1053 = vmatpush1.msra.mxu0 0.0
    %1054 = vmatprep.subr.mxu0 0.0
    %1055 = vmatpush1.msra.mxu0 0.0
    %1056 = vmatprep.subr.mxu0 0.0
    %1057 = vmatpush1.msra.mxu0 0.0
    %1058 = vmatprep.subr.mxu0 0.0
    %1059 = vmatpush1.msra.mxu0 0.0
    %1060 = vmatprep.subr.mxu0 0.0
    %1061 = vmatpush1.msra.mxu0 0.0
    %1062 = vmatprep.subr.mxu0 0.0
    %1063 = vmatpush1.msra.mxu0 0.0
    %1064 = vmatprep.subr.mxu0 0.0
    %1065 = vmatpush1.msra.mxu0 0.0
    %1066 = vmatprep.subr.mxu0 0.0
    %1067 = vmatpush1.msra.mxu0 %v400
    %1068 = vmatprep.subr.mxu0 0.0
    %1069 = vmatpush1.msra.mxu0 %v399
    %1070 = vmatprep.subr.mxu0 0.0
    %1071 = vmatpush1.msra.mxu0 %v398
    %1072 = vmatprep.subr.mxu0 0.0
    %1073 = vmatpush1.msra.mxu0 %v397
    %1074 = vmatprep.subr.mxu0 0.0
    %1075 = vmatpush2.msra.mxu0 0.0
    %1076 = vmatprep.subr.mxu0 0.0
    %1077 = vmatpush2.msra.mxu0 0.0
    %1078 = vmatprep.subr.mxu0 0.0
    %1079 = vmatpush2.msra.mxu0 0.0
    %1080 = vmatprep.subr.mxu0 0.0
    %1081 = vmatpush2.msra.mxu0 0.0
    %1082 = vmatprep.subr.mxu0 0.0
    %1083 = vmatpush2.msra.mxu0 0.0
    %1084 = vmatprep.subr.mxu0 0.0
    %1085 = vmatpush2.msra.mxu0 0.0
    %1086 = vmatprep.subr.mxu0 0.0
    %1087 = vmatpush2.msra.mxu0 0.0
    %1088 = vmatprep.subr.mxu0 0.0
    %1089 = vmatpush2.msra.mxu0 0.0
    %1090 = vmatprep.subr.mxu0 0.0
    %1091 = vmatpush2.msra.mxu0 0.0
    %1092 = vmatprep.subr.mxu0 0.0
    %1093 = vmatpush2.msra.mxu0 0.0
    %1094 = vmatprep.subr.mxu0 0.0
    %1095 = vmatpush2.msra.mxu0 0.0
    %1096 = vmatprep.subr.mxu0 0.0
    %1097 = vmatpush2.msra.mxu0 0.0
    %1098 = vmatprep.subr.mxu0 0.0
    %1099 = vmatpush2.msra.mxu0 0.0
    %1100 = vmatprep.subr.mxu0 0.0
    %1101 = vmatpush2.msra.mxu0 0.0
    %1102 = vmatprep.subr.mxu0 0.0
    %1103 = vmatpush2.msra.mxu0 0.0
    %1104 = vmatprep.subr.mxu0 0.0
    %1105 = vmatpush2.msra.mxu0 0.0
    %1106 = vmatprep.mubr.f32.mxu0 0.0
    %1107 = vmatmul.mubr.f32.gmra.mxu0 %v1040
    %v1108 = vpop.f32.mrf.mxu0
    %v1109 = vadd.f32 0.0, %v1108
    %v1110 = vpop.f32.mrf.mxu0
    %1111 = vdwg.mxu0
    %v1113 = vrot.slane %v1109, 4
    %v1115 = vadd.f32 %v240, %v1113
    %v1116 = vxor.u32 %v1115, 2147483648
    %v1117 = vmul.f32 %v1116, 1.442695
    %v1118 = vpow.pop %v1117
    %v1119 = vadd.f32 %v1118, 1.0
    %v1120 = vrcp.pop %v1119
    %v1121 = vmul.f32 1.0, %v1120
    %v1122 = vtanh.pop %v1115
    %v1124 = vrot.slane %v1029, 6
    %v1126 = vmul.f32 %v1121, %v1124
    %1128 = vrot.lane.b32.xlu0 %v1122, 64
    %v1129 = vpop.permute.xlu0 %1128
    %v1131 = vmul.f32 %v1121, %v1129
    %1133 = vrot.lane.b32.xlu0 %v1131, 32
    %v1134 = vpop.permute.xlu0 %1133
    %v1136 = vadd.f32 %v1126, %v1134
    %v1137 = vtanh.pop %v1136
    %1139 = vrot.lane.b32.xlu0 %v1137, 64
    %v1140 = vpop.permute.xlu0 %1139
    %v1142 = vmul.f32 %v1121, %v1140
    %v1144 = vrot.slane %v1142, 4
    %1145 = vrot.lane.b32.xlu0 %v1144, 32
    %v1146 = vpop.permute.xlu0 %1145
    %v1147 = vsel %vm403, %v1146, 0
    %1149 = vmatprep.subr.mxu0 0.0
    %1150 = vmatpush1.msra.mxu0 0.0
    %1151 = vmatprep.subr.mxu0 0.0
    %1152 = vmatpush1.msra.mxu0 0.0
    %1153 = vmatprep.subr.mxu0 0.0
    %1154 = vmatpush1.msra.mxu0 0.0
    %1155 = vmatprep.subr.mxu0 0.0
    %1156 = vmatpush1.msra.mxu0 0.0
    %1157 = vmatprep.subr.mxu0 0.0
    %1158 = vmatpush1.msra.mxu0 0.0
    %1159 = vmatprep.subr.mxu0 0.0
    %1160 = vmatpush1.msra.mxu0 0.0
    %1161 = vmatprep.subr.mxu0 0.0
    %1162 = vmatpush1.msra.mxu0 0.0
    %1163 = vmatprep.subr.mxu0 0.0
    %1164 = vmatpush1.msra.mxu0 0.0
    %1165 = vmatprep.subr.mxu0 0.0
    %1166 = vmatpush1.msra.mxu0 0.0
    %1167 = vmatprep.subr.mxu0 0.0
    %1168 = vmatpush1.msra.mxu0 0.0
    %1169 = vmatprep.subr.mxu0 0.0
    %1170 = vmatpush1.msra.mxu0 0.0
    %1171 = vmatprep.subr.mxu0 0.0
    %1172 = vmatpush1.msra.mxu0 0.0
    %1173 = vmatprep.subr.mxu0 0.0
    %1174 = vmatpush1.msra.mxu0 %v400
    %1175 = vmatprep.subr.mxu0 0.0
    %1176 = vmatpush1.msra.mxu0 %v399
    %1177 = vmatprep.subr.mxu0 0.0
    %1178 = vmatpush1.msra.mxu0 %v398
    %1179 = vmatprep.subr.mxu0 0.0
    %1180 = vmatpush1.msra.mxu0 %v397
    %1181 = vmatprep.subr.mxu0 0.0
    %1182 = vmatpush2.msra.mxu0 0.0
    %1183 = vmatprep.subr.mxu0 0.0
    %1184 = vmatpush2.msra.mxu0 0.0
    %1185 = vmatprep.subr.mxu0 0.0
    %1186 = vmatpush2.msra.mxu0 0.0
    %1187 = vmatprep.subr.mxu0 0.0
    %1188 = vmatpush2.msra.mxu0 0.0
    %1189 = vmatprep.subr.mxu0 0.0
    %1190 = vmatpush2.msra.mxu0 0.0
    %1191 = vmatprep.subr.mxu0 0.0
    %1192 = vmatpush2.msra.mxu0 0.0
    %1193 = vmatprep.subr.mxu0 0.0
    %1194 = vmatpush2.msra.mxu0 0.0
    %1195 = vmatprep.subr.mxu0 0.0
    %1196 = vmatpush2.msra.mxu0 0.0
    %1197 = vmatprep.subr.mxu0 0.0
    %1198 = vmatpush2.msra.mxu0 0.0
    %1199 = vmatprep.subr.mxu0 0.0
    %1200 = vmatpush2.msra.mxu0 0.0
    %1201 = vmatprep.subr.mxu0 0.0
    %1202 = vmatpush2.msra.mxu0 0.0
    %1203 = vmatprep.subr.mxu0 0.0
    %1204 = vmatpush2.msra.mxu0 0.0
    %1205 = vmatprep.subr.mxu0 0.0
    %1206 = vmatpush2.msra.mxu0 0.0
    %1207 = vmatprep.subr.mxu0 0.0
    %1208 = vmatpush2.msra.mxu0 0.0
    %1209 = vmatprep.subr.mxu0 0.0
    %1210 = vmatpush2.msra.mxu0 0.0
    %1211 = vmatprep.subr.mxu0 0.0
    %1212 = vmatpush2.msra.mxu0 0.0
    %1213 = vmatprep.mubr.f32.mxu0 0.0
    %1214 = vmatmul.mubr.f32.gmra.mxu0 %v1147
    %v1215 = vpop.f32.mrf.mxu0
    %v1216 = vadd.f32 0.0, %v1215
    %v1217 = vpop.f32.mrf.mxu0
    %1218 = vdwg.mxu0
    %v1220 = vrot.slane %v1216, 2
    %v1222 = vadd.f32 %v239, %v1220
    %v1223 = vxor.u32 %v1222, 2147483648
    %v1224 = vmul.f32 %v1223, 1.442695
    %v1225 = vpow.pop %v1224
    %v1226 = vadd.f32 %v1225, 1.0
    %v1227 = vrcp.pop %v1226
    %v1228 = vmul.f32 1.0, %v1227
    %v1229 = vtanh.pop %v1222
    %v1231 = vrot.slane %v1136, 6
    %v1233 = vmul.f32 %v1228, %v1231
    %1235 = vrot.lane.b32.xlu0 %v1229, 64
    %v1236 = vpop.permute.xlu0 %1235
    %v1238 = vmul.f32 %v1228, %v1236
    %1240 = vrot.lane.b32.xlu0 %v1238, 32
    %v1241 = vpop.permute.xlu0 %1240
    %v1243 = vadd.f32 %v1233, %v1241
    %v1244 = vtanh.pop %v1243
    %1246 = vrot.lane.b32.xlu0 %v1244, 64
    %v1247 = vpop.permute.xlu0 %1246
    %v1249 = vmul.f32 %v1228, %v1247
    %v1250 = vld [vmem:[%s8] sm:$0xff]
    %v1251 = vld [vmem:[%s8 + $0x8] sm:$0xff]
    %v1252 = vld [vmem:[%s8 + $0x10] sm:$0xff]
    %v1253 = vld [vmem:[%s8 + $0x18] sm:$0xff]
    %v1255 = vrot.slane %v1249, 6
    %1256 = vrot.lane.b32.xlu0 %v1255, 32
    %v1257 = vpop.permute.xlu0 %1256
    %v1258 = vsel %vm403, %v1257, 0
    %1260 = vmatprep.subr.mxu0 0.0
    %1261 = vmatpush1.msra.mxu0 0.0
    %1262 = vmatprep.subr.mxu0 0.0
    %1263 = vmatpush1.msra.mxu0 0.0
    %1264 = vmatprep.subr.mxu0 0.0
    %1265 = vmatpush1.msra.mxu0 0.0
    %1266 = vmatprep.subr.mxu0 0.0
    %1267 = vmatpush1.msra.mxu0 0.0
    %1268 = vmatprep.subr.mxu0 0.0
    %1269 = vmatpush1.msra.mxu0 0.0
    %1270 = vmatprep.subr.mxu0 0.0
    %1271 = vmatpush1.msra.mxu0 0.0
    %1272 = vmatprep.subr.mxu0 0.0
    %1273 = vmatpush1.msra.mxu0 0.0
    %1274 = vmatprep.subr.mxu0 0.0
    %1275 = vmatpush1.msra.mxu0 0.0
    %1276 = vmatprep.subr.mxu0 0.0
    %1277 = vmatpush1.msra.mxu0 0.0
    %1278 = vmatprep.subr.mxu0 0.0
    %1279 = vmatpush1.msra.mxu0 0.0
    %1280 = vmatprep.subr.mxu0 0.0
    %1281 = vmatpush1.msra.mxu0 0.0
    %1282 = vmatprep.subr.mxu0 0.0
    %1283 = vmatpush1.msra.mxu0 0.0
    %1284 = vmatprep.subr.mxu0 0.0
    %1285 = vmatpush1.msra.mxu0 %v1253
    %1286 = vmatprep.subr.mxu0 0.0
    %1287 = vmatpush1.msra.mxu0 %v1252
    %1288 = vmatprep.subr.mxu0 0.0
    %1289 = vmatpush1.msra.mxu0 %v1251
    %1290 = vmatprep.subr.mxu0 0.0
    %1291 = vmatpush1.msra.mxu0 %v1250
    %1292 = vmatprep.subr.mxu0 0.0
    %1293 = vmatpush2.msra.mxu0 0.0
    %1294 = vmatprep.subr.mxu0 0.0
    %1295 = vmatpush2.msra.mxu0 0.0
    %1296 = vmatprep.subr.mxu0 0.0
    %1297 = vmatpush2.msra.mxu0 0.0
    %1298 = vmatprep.subr.mxu0 0.0
    %1299 = vmatpush2.msra.mxu0 0.0
    %1300 = vmatprep.subr.mxu0 0.0
    %1301 = vmatpush2.msra.mxu0 0.0
    %1302 = vmatprep.subr.mxu0 0.0
    %1303 = vmatpush2.msra.mxu0 0.0
    %1304 = vmatprep.subr.mxu0 0.0
    %1305 = vmatpush2.msra.mxu0 0.0
    %1306 = vmatprep.subr.mxu0 0.0
    %1307 = vmatpush2.msra.mxu0 0.0
    %1308 = vmatprep.subr.mxu0 0.0
    %1309 = vmatpush2.msra.mxu0 0.0
    %1310 = vmatprep.subr.mxu0 0.0
    %1311 = vmatpush2.msra.mxu0 0.0
    %1312 = vmatprep.subr.mxu0 0.0
    %1313 = vmatpush2.msra.mxu0 0.0
    %1314 = vmatprep.subr.mxu0 0.0
    %1315 = vmatpush2.msra.mxu0 0.0
    %1316 = vmatprep.subr.mxu0 0.0
    %1317 = vmatpush2.msra.mxu0 0.0
    %1318 = vmatprep.subr.mxu0 0.0
    %1319 = vmatpush2.msra.mxu0 0.0
    %1320 = vmatprep.subr.mxu0 0.0
    %1321 = vmatpush2.msra.mxu0 0.0
    %1322 = vmatprep.subr.mxu0 0.0
    %1323 = vmatpush2.msra.mxu0 0.0
    %1324 = vmatprep.mubr.f32.mxu0 0.0
    %1325 = vmatmul.mubr.f32.gmra.mxu0 %v1258
    %v1326 = vpop.f32.mrf.mxu0
    %v1327 = vadd.f32 0.0, %v1326
    %v1328 = vpop.f32.mrf.mxu0
    %1329 = vdwg.mxu0
    %v1330 = vadd.f32 %v396, %v1327
    %v1331 = vxor.u32 %v1330, 2147483648
    %v1332 = vmul.f32 %v1331, 1.442695
    %v1333 = vpow.pop %v1332
    %v1334 = vadd.f32 %v1333, 1.0
    %v1335 = vrcp.pop %v1334
    %v1336 = vmul.f32 1.0, %v1335
    %v1337 = vtanh.pop %v1330
    %v1339 = vrot.slane %v1243, 6
    %v1341 = vmul.f32 %v1336, %v1339
    %1343 = vrot.lane.b32.xlu0 %v1337, 64
    %v1344 = vpop.permute.xlu0 %1343
    %v1346 = vmul.f32 %v1336, %v1344
    %1348 = vrot.lane.b32.xlu0 %v1346, 32
    %v1349 = vpop.permute.xlu0 %1348
    %v1351 = vadd.f32 %v1341, %v1349
    %v1352 = vtanh.pop %v1351
    %1354 = vrot.lane.b32.xlu0 %v1352, 64
    %v1355 = vpop.permute.xlu0 %1354
    %v1357 = vmul.f32 %v1336, %v1355
    %v1358 = vld [vmem:[%s10] sm:$0xff]
    %v1359 = vld [vmem:[%s10 + $0x8] sm:$0xff]
    %v1360 = vld [vmem:[%s10 + $0x10] sm:$0xff]
    %v1361 = vld [vmem:[%s10 + $0x18] sm:$0xff]
    %v1362 = vld [vmem:[%s11] sm:$0x1]
    %v1364 = vlaneseq
    %v1365 = vshrl.u32 %v1364, 7
    %v1366 = vsub.s32 0, %v1365
    %v1367 = vrot.slane %v1362, %v1366
    %1370 = vrot.lane.b32.xlu0 %v1357, 32
    %v1371 = vpop.permute.xlu0 %1370
    %v1372 = vsel %vm403, %v1371, 0
    %1374 = vmatprep.subr.mxu0 0.0
    %1375 = vmatpush1.msra.mxu0 0.0
    %1376 = vmatprep.subr.mxu0 0.0
    %1377 = vmatpush1.msra.mxu0 0.0
    %1378 = vmatprep.subr.mxu0 0.0
    %1379 = vmatpush1.msra.mxu0 0.0
    %1380 = vmatprep.subr.mxu0 0.0
    %1381 = vmatpush1.msra.mxu0 0.0
    %1382 = vmatprep.subr.mxu0 0.0
    %1383 = vmatpush1.msra.mxu0 0.0
    %1384 = vmatprep.subr.mxu0 0.0
    %1385 = vmatpush1.msra.mxu0 0.0
    %1386 = vmatprep.subr.mxu0 0.0
    %1387 = vmatpush1.msra.mxu0 0.0
    %1388 = vmatprep.subr.mxu0 0.0
    %1389 = vmatpush1.msra.mxu0 0.0
    %1390 = vmatprep.subr.mxu0 0.0
    %1391 = vmatpush1.msra.mxu0 0.0
    %1392 = vmatprep.subr.mxu0 0.0
    %1393 = vmatpush1.msra.mxu0 0.0
    %1394 = vmatprep.subr.mxu0 0.0
    %1395 = vmatpush1.msra.mxu0 0.0
    %1396 = vmatprep.subr.mxu0 0.0
    %1397 = vmatpush1.msra.mxu0 0.0
    %1398 = vmatprep.subr.mxu0 0.0
    %1399 = vmatpush1.msra.mxu0 %v1361
    %1400 = vmatprep.subr.mxu0 0.0
    %1401 = vmatpush1.msra.mxu0 %v1360
    %1402 = vmatprep.subr.mxu0 0.0
    %1403 = vmatpush1.msra.mxu0 %v1359
    %1404 = vmatprep.subr.mxu0 0.0
    %1405 = vmatpush1.msra.mxu0 %v1358
    %1406 = vmatprep.subr.mxu0 0.0
    %1407 = vmatpush2.msra.mxu0 0.0
    %1408 = vmatprep.subr.mxu0 0.0
    %1409 = vmatpush2.msra.mxu0 0.0
    %1410 = vmatprep.subr.mxu0 0.0
    %1411 = vmatpush2.msra.mxu0 0.0
    %1412 = vmatprep.subr.mxu0 0.0
    %1413 = vmatpush2.msra.mxu0 0.0
    %1414 = vmatprep.subr.mxu0 0.0
    %1415 = vmatpush2.msra.mxu0 0.0
    %1416 = vmatprep.subr.mxu0 0.0
    %1417 = vmatpush2.msra.mxu0 0.0
    %1418 = vmatprep.subr.mxu0 0.0
    %1419 = vmatpush2.msra.mxu0 0.0
    %1420 = vmatprep.subr.mxu0 0.0
    %1421 = vmatpush2.msra.mxu0 0.0
    %1422 = vmatprep.subr.mxu0 0.0
    %1423 = vmatpush2.msra.mxu0 0.0
    %1424 = vmatprep.subr.mxu0 0.0
    %1425 = vmatpush2.msra.mxu0 0.0
    %1426 = vmatprep.subr.mxu0 0.0
    %1427 = vmatpush2.msra.mxu0 0.0
    %1428 = vmatprep.subr.mxu0 0.0
    %1429 = vmatpush2.msra.mxu0 0.0
    %1430 = vmatprep.subr.mxu0 0.0
    %1431 = vmatpush2.msra.mxu0 0.0
    %1432 = vmatprep.subr.mxu0 0.0
    %1433 = vmatpush2.msra.mxu0 0.0
    %1434 = vmatprep.subr.mxu0 0.0
    %1435 = vmatpush2.msra.mxu0 0.0
    %1436 = vmatprep.subr.mxu0 0.0
    %1437 = vmatpush2.msra.mxu0 0.0
    %1438 = vmatprep.mubr.f32.mxu0 0.0
    %1439 = vmatmul.mubr.f32.gmra.mxu0 %v1372
    %v1440 = vpop.f32.mrf.mxu0
    %v1441 = vadd.f32 %v1367, %v1440
    %v1442 = vpop.f32.mrf.mxu0
    %1443 = vdwg.mxu0
    %v1444 = vxor.u32 %v1441, 2147483648
    %v1445 = vmul.f32 %v1444, 1.442695
    %v1446 = vpow.pop %v1445
    %v1447 = vadd.f32 %v1446, 1.0
    %v1448 = vrcp.pop %v1447
    %v1449 = vmul.f32 1.0, %v1448
    %v1450 = vtanh.pop %v1441
    %v1451 = vmul.f32 %v1449, %v1351
    %1453 = vrot.lane.b32.xlu0 %v1450, 64
    %v1454 = vpop.permute.xlu0 %1453
    %v1456 = vmul.f32 %v1449, %v1454
    %1458 = vrot.lane.b32.xlu0 %v1456, 32
    %v1459 = vpop.permute.xlu0 %1458
    %v1461 = vadd.f32 %v1451, %v1459
    %v1462 = vtanh.pop %v1461
    %1464 = vrot.lane.b32.xlu0 %v1462, 64
    %v1465 = vpop.permute.xlu0 %1464
    %v1467 = vmul.f32 %v1449, %v1465
    %1469 = vrot.lane.b32.xlu0 %v1467, 32
    %v1470 = vpop.permute.xlu0 %1469
    %v1471 = vsel %vm403, %v1470, 0
    %1473 = vmatprep.subr.mxu0 0.0
    %1474 = vmatpush1.msra.mxu0 0.0
    %1475 = vmatprep.subr.mxu0 0.0
    %1476 = vmatpush1.msra.mxu0 0.0
    %1477 = vmatprep.subr.mxu0 0.0
    %1478 = vmatpush1.msra.mxu0 0.0
    %1479 = vmatprep.subr.mxu0 0.0
    %1480 = vmatpush1.msra.mxu0 0.0
    %1481 = vmatprep.subr.mxu0 0.0
    %1482 = vmatpush1.msra.mxu0 0.0
    %1483 = vmatprep.subr.mxu0 0.0
    %1484 = vmatpush1.msra.mxu0 0.0
    %1485 = vmatprep.subr.mxu0 0.0
    %1486 = vmatpush1.msra.mxu0 0.0
    %1487 = vmatprep.subr.mxu0 0.0
    %1488 = vmatpush1.msra.mxu0 0.0
    %1489 = vmatprep.subr.mxu0 0.0
    %1490 = vmatpush1.msra.mxu0 0.0
    %1491 = vmatprep.subr.mxu0 0.0
    %1492 = vmatpush1.msra.mxu0 0.0
    %1493 = vmatprep.subr.mxu0 0.0
    %1494 = vmatpush1.msra.mxu0 0.0
    %1495 = vmatprep.subr.mxu0 0.0
    %1496 = vmatpush1.msra.mxu0 0.0
    %1497 = vmatprep.subr.mxu0 0.0
    %1498 = vmatpush1.msra.mxu0 %v1361
    %1499 = vmatprep.subr.mxu0 0.0
    %1500 = vmatpush1.msra.mxu0 %v1360
    %1501 = vmatprep.subr.mxu0 0.0
    %1502 = vmatpush1.msra.mxu0 %v1359
    %1503 = vmatprep.subr.mxu0 0.0
    %1504 = vmatpush1.msra.mxu0 %v1358
    %1505 = vmatprep.subr.mxu0 0.0
    %1506 = vmatpush2.msra.mxu0 0.0
    %1507 = vmatprep.subr.mxu0 0.0
    %1508 = vmatpush2.msra.mxu0 0.0
    %1509 = vmatprep.subr.mxu0 0.0
    %1510 = vmatpush2.msra.mxu0 0.0
    %1511 = vmatprep.subr.mxu0 0.0
    %1512 = vmatpush2.msra.mxu0 0.0
    %1513 = vmatprep.subr.mxu0 0.0
    %1514 = vmatpush2.msra.mxu0 0.0
    %1515 = vmatprep.subr.mxu0 0.0
    %1516 = vmatpush2.msra.mxu0 0.0
    %1517 = vmatprep.subr.mxu0 0.0
    %1518 = vmatpush2.msra.mxu0 0.0
    %1519 = vmatprep.subr.mxu0 0.0
    %1520 = vmatpush2.msra.mxu0 0.0
    %1521 = vmatprep.subr.mxu0 0.0
    %1522 = vmatpush2.msra.mxu0 0.0
    %1523 = vmatprep.subr.mxu0 0.0
    %1524 = vmatpush2.msra.mxu0 0.0
    %1525 = vmatprep.subr.mxu0 0.0
    %1526 = vmatpush2.msra.mxu0 0.0
    %1527 = vmatprep.subr.mxu0 0.0
    %1528 = vmatpush2.msra.mxu0 0.0
    %1529 = vmatprep.subr.mxu0 0.0
    %1530 = vmatpush2.msra.mxu0 0.0
    %1531 = vmatprep.subr.mxu0 0.0
    %1532 = vmatpush2.msra.mxu0 0.0
    %1533 = vmatprep.subr.mxu0 0.0
    %1534 = vmatpush2.msra.mxu0 0.0
    %1535 = vmatprep.subr.mxu0 0.0
    %1536 = vmatpush2.msra.mxu0 0.0
    %1537 = vmatprep.mubr.f32.mxu0 0.0
    %1538 = vmatmul.mubr.f32.gmra.mxu0 %v1471
    %v1539 = vpop.f32.mrf.mxu0
    %v1540 = vadd.f32 %v1367, %v1539
    %v1541 = vpop.f32.mrf.mxu0
    %1542 = vdwg.mxu0
    %v1543 = vxor.u32 %v1540, 2147483648
    %v1544 = vmul.f32 %v1543, 1.442695
    %v1545 = vpow.pop %v1544
    %v1546 = vadd.f32 %v1545, 1.0
    %v1547 = vrcp.pop %v1546
    %v1548 = vmul.f32 1.0, %v1547
    %v1549 = vtanh.pop %v1540
    %v1550 = vmul.f32 %v1548, %v1461
    %1552 = vrot.lane.b32.xlu0 %v1549, 64
    %v1553 = vpop.permute.xlu0 %1552
    %v1555 = vmul.f32 %v1548, %v1553
    %1557 = vrot.lane.b32.xlu0 %v1555, 32
    %v1558 = vpop.permute.xlu0 %1557
    %v1560 = vadd.f32 %v1550, %v1558
    %v1561 = vtanh.pop %v1560
    %1563 = vrot.lane.b32.xlu0 %v1561, 64
    %v1564 = vpop.permute.xlu0 %1563
    %v1566 = vmul.f32 %v1548, %v1564
    %1568 = vrot.lane.b32.xlu0 %v1566, 32
    %v1569 = vpop.permute.xlu0 %1568
    %v1570 = vsel %vm403, %v1569, 0
    %1572 = vmatprep.subr.mxu0 0.0
    %1573 = vmatpush1.msra.mxu0 0.0
    %1574 = vmatprep.subr.mxu0 0.0
    %1575 = vmatpush1.msra.mxu0 0.0
    %1576 = vmatprep.subr.mxu0 0.0
    %1577 = vmatpush1.msra.mxu0 0.0
    %1578 = vmatprep.subr.mxu0 0.0
    %1579 = vmatpush1.msra.mxu0 0.0
    %1580 = vmatprep.subr.mxu0 0.0
    %1581 = vmatpush1.msra.mxu0 0.0
    %1582 = vmatprep.subr.mxu0 0.0
    %1583 = vmatpush1.msra.mxu0 0.0
    %1584 = vmatprep.subr.mxu0 0.0
    %1585 = vmatpush1.msra.mxu0 0.0
    %1586 = vmatprep.subr.mxu0 0.0
    %1587 = vmatpush1.msra.mxu0 0.0
    %1588 = vmatprep.subr.mxu0 0.0
    %1589 = vmatpush1.msra.mxu0 0.0
    %1590 = vmatprep.subr.mxu0 0.0
    %1591 = vmatpush1.msra.mxu0 0.0
    %1592 = vmatprep.subr.mxu0 0.0
    %1593 = vmatpush1.msra.mxu0 0.0
    %1594 = vmatprep.subr.mxu0 0.0
    %1595 = vmatpush1.msra.mxu0 0.0
    %1596 = vmatprep.subr.mxu0 0.0
    %1597 = vmatpush1.msra.mxu0 %v1361
    %1598 = vmatprep.subr.mxu0 0.0
    %1599 = vmatpush1.msra.mxu0 %v1360
    %1600 = vmatprep.subr.mxu0 0.0
    %1601 = vmatpush1.msra.mxu0 %v1359
    %1602 = vmatprep.subr.mxu0 0.0
    %1603 = vmatpush1.msra.mxu0 %v1358
    %1604 = vmatprep.subr.mxu0 0.0
    %1605 = vmatpush2.msra.mxu0 0.0
    %1606 = vmatprep.subr.mxu0 0.0
    %1607 = vmatpush2.msra.mxu0 0.0
    %1608 = vmatprep.subr.mxu0 0.0
    %1609 = vmatpush2.msra.mxu0 0.0
    %1610 = vmatprep.subr.mxu0 0.0
    %1611 = vmatpush2.msra.mxu0 0.0
    %1612 = vmatprep.subr.mxu0 0.0
    %1613 = vmatpush2.msra.mxu0 0.0
    %1614 = vmatprep.subr.mxu0 0.0
    %1615 = vmatpush2.msra.mxu0 0.0
    %1616 = vmatprep.subr.mxu0 0.0
    %1617 = vmatpush2.msra.mxu0 0.0
    %1618 = vmatprep.subr.mxu0 0.0
    %1619 = vmatpush2.msra.mxu0 0.0
    %1620 = vmatprep.subr.mxu0 0.0
    %1621 = vmatpush2.msra.mxu0 0.0
    %1622 = vmatprep.subr.mxu0 0.0
    %1623 = vmatpush2.msra.mxu0 0.0
    %1624 = vmatprep.subr.mxu0 0.0
    %1625 = vmatpush2.msra.mxu0 0.0
    %1626 = vmatprep.subr.mxu0 0.0
    %1627 = vmatpush2.msra.mxu0 0.0
    %1628 = vmatprep.subr.mxu0 0.0
    %1629 = vmatpush2.msra.mxu0 0.0
    %1630 = vmatprep.subr.mxu0 0.0
    %1631 = vmatpush2.msra.mxu0 0.0
    %1632 = vmatprep.subr.mxu0 0.0
    %1633 = vmatpush2.msra.mxu0 0.0
    %1634 = vmatprep.subr.mxu0 0.0
    %1635 = vmatpush2.msra.mxu0 0.0
    %1636 = vmatprep.mubr.f32.mxu0 0.0
    %1637 = vmatmul.mubr.f32.gmra.mxu0 %v1570
    %v1638 = vpop.f32.mrf.mxu0
    %v1639 = vadd.f32 %v1367, %v1638
    %v1640 = vpop.f32.mrf.mxu0
    %1641 = vdwg.mxu0
    %v1642 = vxor.u32 %v1639, 2147483648
    %v1643 = vmul.f32 %v1642, 1.442695
    %v1644 = vpow.pop %v1643
    %v1645 = vadd.f32 %v1644, 1.0
    %v1646 = vrcp.pop %v1645
    %v1647 = vmul.f32 1.0, %v1646
    %v1648 = vtanh.pop %v1639
    %v1649 = vmul.f32 %v1647, %v1560
    %1651 = vrot.lane.b32.xlu0 %v1648, 64
    %v1652 = vpop.permute.xlu0 %1651
    %v1654 = vmul.f32 %v1647, %v1652
    %1656 = vrot.lane.b32.xlu0 %v1654, 32
    %v1657 = vpop.permute.xlu0 %1656
    %v1659 = vadd.f32 %v1649, %v1657
    %v1660 = vtanh.pop %v1659
    %1662 = vrot.lane.b32.xlu0 %v1660, 64
    %v1663 = vpop.permute.xlu0 %1662
    %v1665 = vmul.f32 %v1647, %v1663
    %1667 = vrot.lane.b32.xlu0 %v1467, 64
    %v1668 = vpop.permute.xlu0 %1667
    %1670 = vrot.lane.b32.xlu0 %v1566, 96
    %v1671 = vpop.permute.xlu0 %1670
    %v1673 = vsel %vm403, %v1371, %v1668
    %vm1674 = vcmask 523264
    %v1675 = vsel %vm1674, %v1673, %v1671
    %vm1676 = vcmask 785408
    %v1677 = vsel %vm1676, %v1675, %v1665
    %v1678 = vld [vmem:[%s12] sm:$0xff]
    %v1679 = vld [vmem:[%s12 + $0x8] sm:$0xff]
    %v1680 = vld [vmem:[%s12 + $0x10] sm:$0xff]
    %v1681 = vld [vmem:[%s12 + $0x18] sm:$0xff]
    %v1682 = vld [vmem:[%s12 + $0x20] sm:$0xff]
    %v1683 = vld [vmem:[%s12 + $0x28] sm:$0xff]
    %v1684 = vld [vmem:[%s12 + $0x30] sm:$0xff]
    %v1685 = vld [vmem:[%s12 + $0x38] sm:$0xff]
    %v1686 = vld [vmem:[%s12 + $0x40] sm:$0xff]
    %v1687 = vld [vmem:[%s12 + $0x48] sm:$0xff]
    %v1688 = vld [vmem:[%s12 + $0x50] sm:$0xff]
    %v1689 = vld [vmem:[%s12 + $0x58] sm:$0xff]
    %v1690 = vld [vmem:[%s12 + $0x60] sm:$0xff]
    %v1691 = vld [vmem:[%s12 + $0x68] sm:$0xff]
    %v1692 = vld [vmem:[%s12 + $0x70] sm:$0xff]
    %v1693 = vld [vmem:[%s12 + $0x78] sm:$0xff]
    %v1694 = vld [vmem:[%s13] sm:$0x1]
    %v1696 = vlaneseq
    %v1697 = vshrl.u32 %v1696, 7
    %v1698 = vsub.s32 0, %v1697
    %v1699 = vrot.slane %v1694, %v1698
    %1701 = vmatprep.subr.mxu0 0.0
    %1702 = vmatpush1.msra.mxu0 %v1693
    %1703 = vmatprep.subr.mxu0 0.0
    %1704 = vmatpush1.msra.mxu0 %v1692
    %1705 = vmatprep.subr.mxu0 0.0
    %1706 = vmatpush1.msra.mxu0 %v1691
    %1707 = vmatprep.subr.mxu0 0.0
    %1708 = vmatpush1.msra.mxu0 %v1690
    %1709 = vmatprep.subr.mxu0 0.0
    %1710 = vmatpush1.msra.mxu0 %v1689
    %1711 = vmatprep.subr.mxu0 0.0
    %1712 = vmatpush1.msra.mxu0 %v1688
    %1713 = vmatprep.subr.mxu0 0.0
    %1714 = vmatpush1.msra.mxu0 %v1687
    %1715 = vmatprep.subr.mxu0 0.0
    %1716 = vmatpush1.msra.mxu0 %v1686
    %1717 = vmatprep.subr.mxu0 0.0
    %1718 = vmatpush1.msra.mxu0 %v1685
    %1719 = vmatprep.subr.mxu0 0.0
    %1720 = vmatpush1.msra.mxu0 %v1684
    %1721 = vmatprep.subr.mxu0 0.0
    %1722 = vmatpush1.msra.mxu0 %v1683
    %1723 = vmatprep.subr.mxu0 0.0
    %1724 = vmatpush1.msra.mxu0 %v1682
    %1725 = vmatprep.subr.mxu0 0.0
    %1726 = vmatpush1.msra.mxu0 %v1681
    %1727 = vmatprep.subr.mxu0 0.0
    %1728 = vmatpush1.msra.mxu0 %v1680
    %1729 = vmatprep.subr.mxu0 0.0
    %1730 = vmatpush1.msra.mxu0 %v1679
    %1731 = vmatprep.subr.mxu0 0.0
    %1732 = vmatpush1.msra.mxu0 %v1678
    %1733 = vmatprep.subr.mxu0 0.0
    %1734 = vmatpush2.msra.mxu0 0.0
    %1735 = vmatprep.subr.mxu0 0.0
    %1736 = vmatpush2.msra.mxu0 0.0
    %1737 = vmatprep.subr.mxu0 0.0
    %1738 = vmatpush2.msra.mxu0 0.0
    %1739 = vmatprep.subr.mxu0 0.0
    %1740 = vmatpush2.msra.mxu0 0.0
    %1741 = vmatprep.subr.mxu0 0.0
    %1742 = vmatpush2.msra.mxu0 0.0
    %1743 = vmatprep.subr.mxu0 0.0
    %1744 = vmatpush2.msra.mxu0 0.0
    %1745 = vmatprep.subr.mxu0 0.0
    %1746 = vmatpush2.msra.mxu0 0.0
    %1747 = vmatprep.subr.mxu0 0.0
    %1748 = vmatpush2.msra.mxu0 0.0
    %1749 = vmatprep.subr.mxu0 0.0
    %1750 = vmatpush2.msra.mxu0 0.0
    %1751 = vmatprep.subr.mxu0 0.0
    %1752 = vmatpush2.msra.mxu0 0.0
    %1753 = vmatprep.subr.mxu0 0.0
    %1754 = vmatpush2.msra.mxu0 0.0
    %1755 = vmatprep.subr.mxu0 0.0
    %1756 = vmatpush2.msra.mxu0 0.0
    %1757 = vmatprep.subr.mxu0 0.0
    %1758 = vmatpush2.msra.mxu0 0.0
    %1759 = vmatprep.subr.mxu0 0.0
    %1760 = vmatpush2.msra.mxu0 0.0
    %1761 = vmatprep.subr.mxu0 0.0
    %1762 = vmatpush2.msra.mxu0 0.0
    %1763 = vmatprep.subr.mxu0 0.0
    %1764 = vmatpush2.msra.mxu0 0.0
    %1765 = vmatprep.mubr.f32.mxu0 0.0
    %1766 = vmatmul.mubr.f32.gmra.mxu0 %v1677
    %v1767 = vpop.f32.mrf.mxu0
    %v1768 = vadd.f32 %v1699, %v1767
    %v1769 = vpop.f32.mrf.mxu0
    %1770 = vdwg.mxu0
    %vm1771 = vcmask 25600
    %1772 = vst.msk [vmem:[#allocation2] sm:$0x3] %vm1771, %v1768
    // Predicated region
    $region58: #{seq2seq_forward.1} parent=1 // pred_check
      _
    $region59: #{seq2seq_forward.1} parent=1 // pred_check_branch
      %1774 = sbr.rel (0) target = $region61
    $region60: #{seq2seq_forward.1} parent=1 // pred_region
      %s1776 = ssub.s32 32, 32
      %1777 = vsyncadd [#allocation3], %s1776
      %s1779 = sshll.u32 [#allocation2], 4
      %s1780 = int_to_ptr.vmem [resolvable:$true] %s1779
      %1782 = dma.vmem_to_hbm [thread:$0]  %s1780, 32, %s14, [#allocation3]
    $region61: #{seq2seq_forward.1} parent=1 // pred_fallthru
      _
    // Predicated region
    $region62: #{seq2seq_forward.1} parent=1 // pred_check
      _
    $region63: #{seq2seq_forward.1} parent=1 // pred_check_branch
      %1784 = sbr.rel (0) target = $region65
    $region64: #{seq2seq_forward.1} parent=1 // pred_region
      %1785 = dma.done [#allocation3], 32
    $region65: #{seq2seq_forward.1} parent=1 // pred_fallthru
      _
    %1786 = vsyncpa [#allocation3], 1

</llo_original>
